<compile_context>
chip_gen: v5e
topology: v5e:2x2
jax: 0.10.0
libtpu: 0.0.40
codegen_flags: <defaults>
</compile_context>

<pallas_src>
import jax
import jax.numpy as jnp
from jax.experimental import pallas as pl
from jax.experimental.pallas import tpu as pltpu


def _leaky_relu(x, slope=0.2):
    return jnp.where(x >= 0, x, slope * x)


def _round_up(n, m):
    return ((n + m - 1) // m) * m


def discriminator_kernel(x_ref, w1_ref, b1_ref, w2_ref, b2_ref, w3_ref, b3_ref,
                         out_ref, xp_ref):
    """Fused 3-layer MLP on one (TB, D) batch tile.

    x arrives as raw f32 (no wrapper cast/pad pass); it is cast to bf16 and
    zero-padded along K into the `xp_ref` VMEM scratch so the first MXU matmul
    sees a 128-aligned contraction dim.  Accumulation, bias adds and LeakyReLU
    run in f32.  The last (256 -> 1) layer is a VPU multiply + XLU reduce.
    """
    D = x_ref.shape[-1]           # static (trace-time) ints
    Dp = xp_ref.shape[-1]

    x_bf = x_ref[...].astype(xp_ref.dtype)                      # (TB, D) bf16
    if Dp == D:
        x_in = x_bf
    else:
        xp_ref[:, :D] = x_bf
        xp_ref[:, D:] = jnp.zeros((xp_ref.shape[0], Dp - D), xp_ref.dtype)
        x_in = xp_ref[...]                                       # (TB, Dp), zero K-pad

    h1 = jnp.dot(x_in, w1_ref[...], preferred_element_type=jnp.float32)
    h1 = _leaky_relu(h1 + b1_ref[...])                           # (TB, 512) f32
    h2 = jnp.dot(h1.astype(jnp.bfloat16), w2_ref[...],
                 preferred_element_type=jnp.float32)
    h2 = _leaky_relu(h2 + b2_ref[...])                           # (TB, 256) f32
    out = jnp.sum(h2 * w3_ref[...], axis=-1, keepdims=True) + b3_ref[...]
    out_ref[...] = out.astype(out_ref.dtype)                     # (TB, 1)


def prepare_params(params):
    """One-time hoisted weight prep (do NOT re-run per training step):
    bf16 MXU weights, w1 zero-padded along K to a multiple of 128, biases as
    (1, N) f32 rows, w3 as a (1, 256) f32 row for the VPU/XLU final layer."""
    w1, b1, w2, b2, w3, b3 = params
    D, H1 = w1.shape
    H2 = w2.shape[1]
    Dp = _round_up(D, 128)
    w1p = jnp.pad(w1, ((0, Dp - D), (0, 0))).astype(jnp.bfloat16)   # (Dp, 512)
    w2b = jnp.asarray(w2).astype(jnp.bfloat16)                      # (512, 256)
    b1r = jnp.asarray(b1, jnp.float32).reshape(1, H1)
    b2r = jnp.asarray(b2, jnp.float32).reshape(1, H2)
    w3r = jnp.asarray(w3, jnp.float32).reshape(1, H2)
    b3r = jnp.asarray(b3, jnp.float32).reshape(1, 1)
    return (w1p, b1r, w2b, b2r, w3r, b3r)


# Per-step VMEM budget for the batch-tiled activations (double-buffered x
# block + padded bf16 scratch + f32 intermediates + output block).
_ACT_VMEM_BUDGET = 20 * 1024 * 1024
_TB_CAP = 1024


def _choose_tile(B, D, Dp, H1, H2, x_itemsize):
    per_row = 2 * D * x_itemsize + Dp * 2 + (H1 + H2) * 4 + 2 * 4
    tb_fit = max(8, (_ACT_VMEM_BUDGET // per_row) // 8 * 8)
    tb_limit = min(_TB_CAP, tb_fit, _round_up(B, 8))
    n_tiles = pl.cdiv(B, tb_limit)
    if B >= 16:
        # Guarantee >=2 balanced grid steps so v7x's 2nd TensorCore gets work.
        n_tiles = max(n_tiles, 2)
    return _round_up(pl.cdiv(B, n_tiles), 8)


def discriminator_forward(img, prepped_params):
    """img: (B, C, H, W). Returns validity (B, 1) float32.

    `prepped_params` must come from prepare_params(); the only wrapper-side
    work here is a free reshape of `img` (no pad, no dtype cast, no copy).
    """
    w1p, b1r, w2b, b2r, w3r, b3r = prepped_params
    B = img.shape[0]
    x = img.reshape(B, -1)                      # same flattening as torch .view
    D = x.shape[1]
    Dp, H1 = w1p.shape
    H2 = w2b.shape[1]
    if Dp != _round_up(D, 128):
        raise ValueError(f"prepared w1 K dim {Dp} does not match input dim {D}")

    itemsize = x.dtype.itemsize
    TB = _choose_tile(B, D, Dp, H1, H2, itemsize)
    grid = (pl.cdiv(B, TB),)                    # ragged last tile handled by Pallas

    # VMEM accounting (weights are double-buffered by the pipeline; negligible
    # here — use pipeline_mode=pl.Buffered(1) on them for very large D).
    weight_bytes = 2 * ((Dp * H1 + H1 * H2) * 2 + (H1 + 2 * H2 + 1) * 4)
    act_bytes = TB * (2 * D * itemsize + Dp * 2 + (H1 + H2) * 4 + 2 * 4)
    vmem_limit = int(min(48 * 1024 * 1024,
                         max(32 * 1024 * 1024,
                             int(1.5 * (weight_bytes + act_bytes)))))

    flops = int(2 * B * (Dp * H1 + H1 * H2 + H2))
    bytes_accessed = int(B * D * itemsize                  # x (single kernel DMA)
                         + (Dp * H1 + H1 * H2) * 2         # bf16 weights
                         + (H1 + 2 * H2 + 1) * 4           # bias rows + w3 row
                         + B * 4)                          # output

    f = pl.pallas_call(
        discriminator_kernel,
        out_shape=jax.ShapeDtypeStruct((B, 1), jnp.float32),
        grid=grid,
        in_specs=[
            pl.BlockSpec((TB, D), lambda i: (i, 0)),    # x: batch-tiled, full feature dim
            pl.BlockSpec((Dp, H1), lambda i: (0, 0)),   # w1: VMEM-resident
            pl.BlockSpec((1, H1), lambda i: (0, 0)),    # b1
            pl.BlockSpec((H1, H2), lambda i: (0, 0)),   # w2
            pl.BlockSpec((1, H2), lambda i: (0, 0)),    # b2
            pl.BlockSpec((1, H2), lambda i: (0, 0)),    # w3 row
            pl.BlockSpec((1, 1), lambda i: (0, 0)),     # b3
        ],
        out_specs=pl.BlockSpec((TB, 1), lambda i: (i, 0)),
        scratch_shapes=[pltpu.VMEM((TB, Dp), jnp.bfloat16)],
        compiler_params=pltpu.CompilerParams(
            dimension_semantics=("parallel",),
            vmem_limit_bytes=vmem_limit),
        cost_estimate=pl.CostEstimate(
            flops=flops, transcendentals=0, bytes_accessed=bytes_accessed),
    )
    return f(x, w1p, b1r, w2b, b2r, w3r, b3r)


def init_params(key, in_dim):
    """Deterministic init mimicking PyTorch Linear default: U(-1/sqrt(fan_in), ...).
    Weights stored as (in_features, out_features); biases as (1, out_features)."""
    dims = [(in_dim, 512), (512, 256), (256, 1)]
    params = []
    for (fan_in, fan_out) in dims:
        key, kw, kb = jax.random.split(key, 3)
        bound = 1.0 / jnp.sqrt(jnp.asarray(fan_in, jnp.float32))
        w = jax.random.uniform(kw, (fan_in, fan_out), jnp.float32, -bound, bound)
        b = jax.random.uniform(kb, (1, fan_out), jnp.float32, -bound, bound)
        params += [w, b]
    return tuple(params)


def reference_forward(img, params):
    """Pure-JAX f32 reference for correctness checking."""
    w1, b1, w2, b2, w3, b3 = params
    x = img.reshape(img.shape[0], -1)
    h1 = _leaky_relu(x @ w1 + b1)
    h2 = _leaky_relu(h1 @ w2 + b2)
    return h2 @ w3 + b3


if __name__ == "__main__":
    # WGAN defaults: channels=1, img_size=28 -> flattened dim 784 (exercises
    # the in-kernel K-padding path and a ragged batch tile). Small batch.
    B, C, H, W = 2, 1, 28, 28
    key = jax.random.PRNGKey(0)
    k_img, k_par = jax.random.split(key)

    img = jax.random.normal(k_img, (B, C, H, W), jnp.float32)
    params = init_params(k_par, C * H * W)
    prepped = prepare_params(params)          # hoisted, one-time weight prep

    out = discriminator_forward(img, prepped)
    out = jax.block_until_ready(out)

    ref = reference_forward(img, params)
    assert out.shape == (B, 1), out.shape
    # bf16 MXU inputs (x, w1, w2, h1) with f32 accumulation -> loose tolerance
    # vs. the f32 reference (intentional precision trade-off for a WGAN critic).
    assert jnp.allclose(out, ref, atol=5e-2, rtol=5e-2), (out, ref)

    print("KERNEL_OK")
</pallas_src>

<mosaic_0001>
module attributes {stable_mosaic.version = 11 : i64} {
  func.func @discriminator_kernel(%arg0: i32, %arg1: memref<8x784xf32, #tpu.memory_space<vmem>>, %arg2: memref<896x512xbf16, #tpu.memory_space<vmem>>, %arg3: memref<1x512xf32, #tpu.memory_space<vmem>>, %arg4: memref<512x256xbf16, #tpu.memory_space<vmem>>, %arg5: memref<1x256xf32, #tpu.memory_space<vmem>>, %arg6: memref<1x256xf32, #tpu.memory_space<vmem>>, %arg7: memref<1x1xf32, #tpu.memory_space<vmem>>, %arg8: memref<8x1xf32, #tpu.memory_space<vmem>>, %arg9: memref<8x896xbf16, #tpu.memory_space<vmem>>) attributes {dimension_semantics = [#tpu.dimension_semantics<parallel>], iteration_bounds = array<i64: 1>, scalar_prefetch = 0 : i64, scratch_operands = 1 : i64, tpu.core_type = #tpu.core_type<tc>, window_params = [{transform_indices = @transform_0, window_bounds = array<i64: 8, 784>}, {pipeline_mode = #tpu.pipeline_mode<synchronous>, transform_indices = @transform_1, window_bounds = array<i64: 896, 512>}, {pipeline_mode = #tpu.pipeline_mode<synchronous>, transform_indices = @transform_2, window_bounds = array<i64: 1, 512>}, {pipeline_mode = #tpu.pipeline_mode<synchronous>, transform_indices = @transform_3, window_bounds = array<i64: 512, 256>}, {pipeline_mode = #tpu.pipeline_mode<synchronous>, transform_indices = @transform_4, window_bounds = array<i64: 1, 256>}, {pipeline_mode = #tpu.pipeline_mode<synchronous>, transform_indices = @transform_5, window_bounds = array<i64: 1, 256>}, {pipeline_mode = #tpu.pipeline_mode<synchronous>, transform_indices = @transform_6, window_bounds = array<i64: 1, 1>}, {transform_indices = @transform_7, window_bounds = array<i64: 8, 1>}]} {
    %c0 = arith.constant 0 : index
    %c0_0 = arith.constant 0 : index
    %0 = vector.load %arg1[%c0, %c0_0] : memref<8x784xf32, #tpu.memory_space<vmem>>, vector<8x784xf32>
    %1 = arith.truncf %0 : vector<8x784xf32> to vector<8x784xbf16>
    %c0_1 = arith.constant 0 : index
    %c0_2 = arith.constant 0 : index
    %2 = vector.load %arg9[%c0_1, %c0_2] : memref<8x896xbf16, #tpu.memory_space<vmem>>, vector<8x784xbf16>
    tpu.vector_store %arg9[%c0_1, %c0_2], %1 {strides = array<i32>} : memref<8x896xbf16, #tpu.memory_space<vmem>>, vector<8x784xbf16>,
    %cst = arith.constant 0.000000e+00 : bf16
    %3 = vector.broadcast %cst : bf16 to vector<8x112xbf16>
    %c0_3 = arith.constant 0 : index
    %c784 = arith.constant 784 : index
    %4 = vector.load %arg9[%c0_3, %c784] : memref<8x896xbf16, #tpu.memory_space<vmem>>, vector<8x112xbf16>
    tpu.vector_store %arg9[%c0_3, %c784], %3 {strides = array<i32>} : memref<8x896xbf16, #tpu.memory_space<vmem>>, vector<8x112xbf16>,
    %c0_4 = arith.constant 0 : index
    %c0_5 = arith.constant 0 : index
    %5 = vector.load %arg9[%c0_4, %c0_5] : memref<8x896xbf16, #tpu.memory_space<vmem>>, vector<8x896xbf16>
    %c0_6 = arith.constant 0 : index
    %c0_7 = arith.constant 0 : index
    %6 = vector.load %arg2[%c0_6, %c0_7] : memref<896x512xbf16, #tpu.memory_space<vmem>>, vector<896x512xbf16>
    %cst_8 = arith.constant dense<0.000000e+00> : vector<8x512xf32>
    %7 = tpu.matmul %5, %6, %cst_8 {dimension_numbers = #tpu.dot_dimension_numbers<[1], [0], [0], [1], [0, 0, 1, 1], [], []>} : vector<8x896xbf16>, vector<896x512xbf16>, vector<8x512xf32> -> vector<8x512xf32>
    %c0_9 = arith.constant 0 : index
    %c0_10 = arith.constant 0 : index
    %8 = vector.load %arg3[%c0_9, %c0_10] : memref<1x512xf32, #tpu.memory_space<vmem>>, vector<1x512xf32>
    %9 = vector.broadcast %8 : vector<1x512xf32> to vector<8x512xf32>
    %10 = arith.addf %7, %9 : vector<8x512xf32>
    %cst_11 = arith.constant 0.000000e+00 : f32
    %11 = vector.broadcast %cst_11 : f32 to vector<8x512xf32>
    %12 = arith.cmpf oge, %10, %11 : vector<8x512xf32>
    %cst_12 = arith.constant 2.000000e-01 : f32
    %13 = vector.broadcast %cst_12 : f32 to vector<8x512xf32>
    %14 = arith.mulf %13, %10 : vector<8x512xf32>
    %15 = arith.select %12, %10, %14 : vector<8x512xi1>, vector<8x512xf32>
    %16 = arith.truncf %15 : vector<8x512xf32> to vector<8x512xbf16>
    %c0_13 = arith.constant 0 : index
    %c0_14 = arith.constant 0 : index
    %17 = vector.load %arg4[%c0_13, %c0_14] : memref<512x256xbf16, #tpu.memory_space<vmem>>, vector<512x256xbf16>
    %cst_15 = arith.constant dense<0.000000e+00> : vector<8x256xf32>
    %18 = tpu.matmul %16, %17, %cst_15 {dimension_numbers = #tpu.dot_dimension_numbers<[1], [0], [0], [1], [0, 0, 1, 1], [], []>} : vector<8x512xbf16>, vector<512x256xbf16>, vector<8x256xf32> -> vector<8x256xf32>
    %c0_16 = arith.constant 0 : index
    %c0_17 = arith.constant 0 : index
    %19 = vector.load %arg5[%c0_16, %c0_17] : memref<1x256xf32, #tpu.memory_space<vmem>>, vector<1x256xf32>
    %20 = vector.broadcast %19 : vector<1x256xf32> to vector<8x256xf32>
    %21 = arith.addf %18, %20 : vector<8x256xf32>
    %cst_18 = arith.constant 0.000000e+00 : f32
    %22 = vector.broadcast %cst_18 : f32 to vector<8x256xf32>
    %23 = arith.cmpf oge, %21, %22 : vector<8x256xf32>
    %cst_19 = arith.constant 2.000000e-01 : f32
    %24 = vector.broadcast %cst_19 : f32 to vector<8x256xf32>
    %25 = arith.mulf %24, %21 : vector<8x256xf32>
    %26 = arith.select %23, %21, %25 : vector<8x256xi1>, vector<8x256xf32>
    %c0_20 = arith.constant 0 : index
    %c0_21 = arith.constant 0 : index
    %27 = vector.load %arg6[%c0_20, %c0_21] : memref<1x256xf32, #tpu.memory_space<vmem>>, vector<1x256xf32>
    %28 = vector.broadcast %27 : vector<1x256xf32> to vector<8x256xf32>
    %29 = arith.mulf %26, %28 : vector<8x256xf32>
    %cst_22 = arith.constant dense<0.000000e+00> : vector<8xf32>
    %30 = vector.multi_reduction <add>, %29, %cst_22 [1] : vector<8x256xf32> to vector<8xf32>
    %31 = vector.shape_cast %30 : vector<8xf32> to vector<8x1xf32>
    %c0_23 = arith.constant 0 : index
    %c0_24 = arith.constant 0 : index
    %32 = vector.load %arg7[%c0_23, %c0_24] : memref<1x1xf32, #tpu.memory_space<vmem>>, vector<1x1xf32>
    %33 = vector.broadcast %32 : vector<1x1xf32> to vector<8x1xf32>
    %34 = arith.addf %31, %33 : vector<8x1xf32>
    %c0_25 = arith.constant 0 : index
    %c0_26 = arith.constant 0 : index
    %35 = vector.load %arg8[%c0_25, %c0_26] : memref<8x1xf32, #tpu.memory_space<vmem>>, vector<8x1xf32>
    tpu.vector_store %arg8[%c0_25, %c0_26], %34 {strides = array<i32>} : memref<8x1xf32, #tpu.memory_space<vmem>>, vector<8x1xf32>,
    return
  }
  func.func @transform_0(%arg0: i32) -> (i32, i32) {
    %c0_i32 = arith.constant 0 : i32
    %c0_i32_0 = arith.constant 0 : i32
    return %arg0, %c0_i32 : i32, i32
  }
  func.func @transform_1(%arg0: i32) -> (i32, i32) {
    %c0_i32 = arith.constant 0 : i32
    %c0_i32_0 = arith.constant 0 : i32
    %c0_i32_1 = arith.constant 0 : i32
    return %c0_i32, %c0_i32_0 : i32, i32
  }
  func.func @transform_2(%arg0: i32) -> (i32, i32) {
    %c0_i32 = arith.constant 0 : i32
    %c0_i32_0 = arith.constant 0 : i32
    %c0_i32_1 = arith.constant 0 : i32
    return %c0_i32, %c0_i32_0 : i32, i32
  }
  func.func @transform_3(%arg0: i32) -> (i32, i32) {
    %c0_i32 = arith.constant 0 : i32
    %c0_i32_0 = arith.constant 0 : i32
    %c0_i32_1 = arith.constant 0 : i32
    return %c0_i32, %c0_i32_0 : i32, i32
  }
  func.func @transform_4(%arg0: i32) -> (i32, i32) {
    %c0_i32 = arith.constant 0 : i32
    %c0_i32_0 = arith.constant 0 : i32
    %c0_i32_1 = arith.constant 0 : i32
    return %c0_i32, %c0_i32_0 : i32, i32
  }
  func.func @transform_5(%arg0: i32) -> (i32, i32) {
    %c0_i32 = arith.constant 0 : i32
    %c0_i32_0 = arith.constant 0 : i32
    %c0_i32_1 = arith.constant 0 : i32
    return %c0_i32, %c0_i32_0 : i32, i32
  }
  func.func @transform_6(%arg0: i32) -> (i32, i32) {
    %c0_i32 = arith.constant 0 : i32
    %c0_i32_0 = arith.constant 0 : i32
    %c0_i32_1 = arith.constant 0 : i32
    return %c0_i32, %c0_i32_0 : i32, i32
  }
  func.func @transform_7(%arg0: i32) -> (i32, i32) {
    %c0_i32 = arith.constant 0 : i32
    %c0_i32_0 = arith.constant 0 : i32
    return %arg0, %c0_i32 : i32, i32
  }
}

</mosaic_0001>

<llo_original>
// kernel: tpu_custom_call.1
$region0: #{tpu_custom_call.1}
  #allocation0 [shape = 'u32[]', space=smem, size = 0x4, offset = 0x4, fixed_abs, tag = 'smem constant byte address 0x4 - core index']
  #allocation1 [shape = 'u32[72,128]{1,0:T(1,128)}', space=vmem, size = 0x9000, scoped, tag = 'internal scratch']
  #allocation2 [shape = 'bf16[8,896]{1,0:T(8,128)(2,1)}', space=vmem, size = 0x3800, scoped, tag = 'scratch operand']
  #allocation3 [shape = 'f32[1,1]{1,0:T(1,128)S(1)}', space=vmem, size = 0x200, scoped, tag = 'scoped memory for tpu_custom_call.1']
  %s0 = inlined_call_operand.hbm [shape: f32[2,784], index: 0, kind: input, shape index: {}]
  %s1 = inlined_call_operand.hbm [shape: bf16[896,512], index: 1, kind: input, shape index: {}]
  %s2 = inlined_call_operand.hbm [shape: f32[1,512], index: 2, kind: input, shape index: {}]
  %s3 = inlined_call_operand.hbm [shape: bf16[512,256], index: 3, kind: input, shape index: {}]
  %s4 = inlined_call_operand.vmem [shape: f32[1,256], index: 4, kind: input, shape index: {}]
  %s5 = inlined_call_operand.vmem [shape: f32[1,256], index: 5, kind: input, shape index: {}]
  %s6 = inlined_call_operand.<no memory space> [shape: f32[1,1], index: 6, kind: input, shape index: {}]
  %s7 = inlined_call_operand.vmem [shape: f32[2,1], index: 7, kind: output, shape index: {}]
  %s8 = sld [smem:[#allocation0]]
  $region84: #{tpu_custom_call.1} parent=0
    _
  %s10 = ssub.s32 1, %s8
  %s11 = scalar_select 0, %s10, %s8
  %v12 = vstv %s6
  %13 = vst [vmem:[#allocation3] sm:$0x1] %v12
  $region1: #{tpu_custom_call.1} parent=0
    #allocation4 [shape = 'u8[28672]{0}', space=vmem, size = 0x7000, scoped, tag = 'input window, operand 0, single buffered']
    #allocation5 [shape = 's32[1]{0}', space=sflag, size = 0x4, scoped, tag = 'scoped memory for tpu_custom_call.1']
    #allocation6 [shape = 'u8[917504]{0}', space=vmem, size = 0xe0000, scoped, tag = 'input window, operand 1, single buffered']
    #allocation7 [shape = 's32[1]{0}', space=sflag, size = 0x4, scoped, tag = 'scoped memory for tpu_custom_call.1']
    #allocation8 [shape = 'u8[2048]{0}', space=vmem, size = 0x800, scoped, tag = 'input window, operand 2, single buffered']
    #allocation9 [shape = 'u8[262144]{0}', space=vmem, size = 0x40000, scoped, tag = 'input window, operand 3, single buffered']
    #allocation10 [shape = 's32[1]{0}', space=sflag, size = 0x4, scoped, tag = 'scoped memory for tpu_custom_call.1']
    #allocation11 [shape = 'u8[4096]{0}', space=vmem, size = 0x1000, scoped, tag = 'output window, operand 0, single buffered']
    %14 = vsyncpa [#allocation5], 0
    %15 = vsyncpa [#allocation7], 0
    %16 = vsyncpa [#allocation10], 0
    // Predicated region
    $region2: #{tpu_custom_call.1} parent=1 // pred_check
      _
    $region3: #{tpu_custom_call.1} parent=1 // pred_check_branch
      %18 = sbr.rel (0) target = $region5
    $region4: #{tpu_custom_call.1} parent=1 // pred_region
      %20 = vsyncadd [#allocation5], 672
      %s21 = sshll.u32 %s0, 4
      %s22 = int_to_ptr.hbm [resolvable:$true] %s21
      %s23 = sshll.u32 [#allocation4], 4
      %s24 = int_to_ptr.vmem [resolvable:$true] %s23
      %29 = dma.hbm_to_vmem [thread:$0]  %s22, 224, %s24, [#allocation5], 224, 224, 14
    $region5: #{tpu_custom_call.1} parent=1 // pred_fallthru
      _
    // Predicated region
    $region6: #{tpu_custom_call.1} parent=1 // pred_check
      _
    $region7: #{tpu_custom_call.1} parent=1 // pred_check_branch
      %31 = sbr.rel (0) target = $region9
    $region8: #{tpu_custom_call.1} parent=1 // pred_region
      %33 = vsyncadd [#allocation7], 0
      %s34 = sshll.u32 %s1, 4
      %s35 = int_to_ptr.hbm [resolvable:$true] %s34
      %s36 = sshll.u32 [#allocation6], 4
      %s37 = int_to_ptr.vmem [resolvable:$true] %s36
      %42 = dma.hbm_to_vmem [thread:$0]  %s35, 28672, %s37, [#allocation7], 256, 256, 16
    $region9: #{tpu_custom_call.1} parent=1 // pred_fallthru
      _
    // Predicated region
    $region10: #{tpu_custom_call.1} parent=1 // pred_check
      _
    $region11: #{tpu_custom_call.1} parent=1 // pred_check_branch
      %44 = sbr.rel (0) target = $region13
    $region12: #{tpu_custom_call.1} parent=1 // pred_region
      %46 = vsyncadd [#allocation7], 0
      %s48 = sshll.u32 %s2, 4
      %s49 = int_to_ptr.hbm [resolvable:$true] %s48
      %s50 = sshll.u32 [#allocation8], 4
      %s51 = int_to_ptr.vmem [resolvable:$true] %s50
      %53 = dma.hbm_to_vmem [thread:$0]  %s49, 64, %s51, [#allocation7]
    $region13: #{tpu_custom_call.1} parent=1 // pred_fallthru
      _
    // Predicated region
    $region14: #{tpu_custom_call.1} parent=1 // pred_check
      _
    $region15: #{tpu_custom_call.1} parent=1 // pred_check_branch
      %55 = sbr.rel (0) target = $region17
    $region16: #{tpu_custom_call.1} parent=1 // pred_region
      %57 = vsyncadd [#allocation10], 0
      %s58 = sshll.u32 %s3, 4
      %s59 = int_to_ptr.hbm [resolvable:$true] %s58
      %s60 = sshll.u32 [#allocation9], 4
      %s61 = int_to_ptr.vmem [resolvable:$true] %s60
      %66 = dma.hbm_to_vmem [thread:$0]  %s59, 8192, %s61, [#allocation10], 128, 128, 8
    $region17: #{tpu_custom_call.1} parent=1 // pred_fallthru
      _
    // Predicated region
    $region18: #{tpu_custom_call.1} parent=1 // pred_check
      _
    $region19: #{tpu_custom_call.1} parent=1 // pred_check_branch
      %68 = sbr.rel (0) target = $region21
    $region20: #{tpu_custom_call.1} parent=1 // pred_region
      _
    $region21: #{tpu_custom_call.1} parent=1 // pred_fallthru
      _
    // Predicated region
    $region22: #{tpu_custom_call.1} parent=1 // pred_check
      _
    $region23: #{tpu_custom_call.1} parent=1 // pred_check_branch
      %70 = sbr.rel (0) target = $region25
    $region24: #{tpu_custom_call.1} parent=1 // pred_region
      _
    $region25: #{tpu_custom_call.1} parent=1 // pred_fallthru
      _
    // Predicated region
    $region26: #{tpu_custom_call.1} parent=1 // pred_check
      _
    $region27: #{tpu_custom_call.1} parent=1 // pred_check_branch
      %72 = sbr.rel (0) target = $region29
    $region28: #{tpu_custom_call.1} parent=1 // pred_region
      _
    $region29: #{tpu_custom_call.1} parent=1 // pred_fallthru
      _
    // Predicated region
    $region30: #{tpu_custom_call.1} parent=1 // pred_check
      _
    $region31: #{tpu_custom_call.1} parent=1 // pred_check_branch
      %74 = sbr.rel (0) target = $region33
    $region32: #{tpu_custom_call.1} parent=1 // pred_region
      %76 = dma.done [#allocation5], 896
    $region33: #{tpu_custom_call.1} parent=1 // pred_fallthru
      _
    // Predicated region
    $region34: #{tpu_custom_call.1} parent=1 // pred_check
      _
    $region35: #{tpu_custom_call.1} parent=1 // pred_check_branch
      %78 = sbr.rel (0) target = $region37
    $region36: #{tpu_custom_call.1} parent=1 // pred_region
      %80 = dma.done [#allocation7], 28672
    $region37: #{tpu_custom_call.1} parent=1 // pred_fallthru
      _
    // Predicated region
    $region38: #{tpu_custom_call.1} parent=1 // pred_check
      _
    $region39: #{tpu_custom_call.1} parent=1 // pred_check_branch
      %82 = sbr.rel (0) target = $region41
    $region40: #{tpu_custom_call.1} parent=1 // pred_region
      %84 = dma.done [#allocation7], 64
    $region41: #{tpu_custom_call.1} parent=1 // pred_fallthru
      _
    // Predicated region
    $region42: #{tpu_custom_call.1} parent=1 // pred_check
      _
    $region43: #{tpu_custom_call.1} parent=1 // pred_check_branch
      %86 = sbr.rel (0) target = $region45
    $region44: #{tpu_custom_call.1} parent=1 // pred_region
      %88 = dma.done [#allocation10], 8192
    $region45: #{tpu_custom_call.1} parent=1 // pred_fallthru
      _
    %v90 = vld [vmem:[#allocation4] sm:$0xff]
    %v91 = vld [vmem:[#allocation4 + $0x8] sm:$0x3f]
    %v92 = vld [vmem:[#allocation4 + $0xe] sm:$0xff]
    %v93 = vld [vmem:[#allocation4 + $0x16] sm:$0x3f]
    %v94 = vld [vmem:[#allocation4 + $0x1c] sm:$0xff]
    %v95 = vld [vmem:[#allocation4 + $0x24] sm:$0x3f]
    %v96 = vld [vmem:[#allocation4 + $0x2a] sm:$0xff]
    %v97 = vld [vmem:[#allocation4 + $0x32] sm:$0x3f]
    %106 = vst [vmem:[#allocation1] ss:$4 sm:$0xff] %v90
    %s107 = scalar_lea.vmem [#allocation1], 1
    %108 = vst [vmem:[%s107] ss:$4 sm:$0xff] %v92
    %s109 = scalar_lea.vmem [#allocation1], 2
    %110 = vst [vmem:[%s109] ss:$4 sm:$0xff] %v94
    %s111 = scalar_lea.vmem [#allocation1], 3
    %112 = vst [vmem:[%s111] ss:$4 sm:$0xff] %v96
    %s113 = scalar_lea.vmem [#allocation1], 32
    %114 = vst [vmem:[%s113] ss:$4 sm:$0xff] %v91
    %s115 = scalar_lea.vmem [#allocation1], 33
    %116 = vst [vmem:[%s115] ss:$4 sm:$0xff] %v93
    %s117 = scalar_lea.vmem [#allocation1], 34
    %118 = vst [vmem:[%s117] ss:$4 sm:$0xff] %v95
    %s119 = scalar_lea.vmem [#allocation1], 35
    %120 = vst [vmem:[%s119] ss:$4 sm:$0xff] %v97
    %v121 = vld.sshfl [vmem:[#allocation1] sm:$0xff pattern:$0x73625140]
    %v122 = vld.sshfl [vmem:[#allocation1 + $0x8] sm:$0xff pattern:$0x73625140]
    %v123 = vld.sshfl [vmem:[#allocation1 + $0x10] sm:$0xff pattern:$0x73625140]
    %v124 = vld.sshfl [vmem:[#allocation1 + $0x18] sm:$0xff pattern:$0x73625140]
    %v125 = vld.sshfl [vmem:[#allocation1 + $0x20] sm:$0xff pattern:$0x73625140]
    %v126 = vld.sshfl [vmem:[#allocation1 + $0x28] sm:$0xff pattern:$0x73625140]
    %v127 = vld.sshfl [vmem:[#allocation1 + $0x30] sm:$0xff pattern:$0x73625140]
    %v135 = vpack.c.bf16 %v122, %v121
    %v136 = vpack.c.bf16 %v124, %v123
    %v137 = vpack.c.bf16 %v126, %v125
    %v138 = vpack.c.bf16 %v127, %v127
    %139 = vst [vmem:[#allocation2] sm:$0xff] %v135
    %140 = vst [vmem:[#allocation2 + $0x8] sm:$0xff] %v136
    %141 = vst [vmem:[#allocation2 + $0x10] sm:$0xff] %v137
    %vm142 = vcmask 125952
    %143 = vst.msk [vmem:[#allocation2 + $0x18] sm:$0xf] %vm142, %v138
    %vm144 = vcmask 1043584
    %145 = vst.msk [vmem:[#allocation2 + $0x18] sm:$0xf] %vm144, 0
    %v146 = vld [vmem:[#allocation2] sm:$0xff]
    %v147 = vld [vmem:[#allocation2 + $0x8] sm:$0xff]
    %v148 = vld [vmem:[#allocation2 + $0x10] sm:$0xff]
    %v149 = vld [vmem:[#allocation2 + $0x18] sm:$0xf]
    %v150 = vld [vmem:[#allocation6] sm:$0xff]
    %v151 = vld [vmem:[#allocation6 + $0x8] sm:$0xff]
    %v152 = vld [vmem:[#allocation6 + $0x10] sm:$0xff]
    %v153 = vld [vmem:[#allocation6 + $0x18] sm:$0xff]
    %v154 = vld [vmem:[#allocation6 + $0x20] sm:$0xff]
    %v155 = vld [vmem:[#allocation6 + $0x28] sm:$0xff]
    %v156 = vld [vmem:[#allocation6 + $0x30] sm:$0xff]
    %v157 = vld [vmem:[#allocation6 + $0x38] sm:$0xff]
    %v158 = vld [vmem:[#allocation6 + $0x40] sm:$0xff]
    %v159 = vld [vmem:[#allocation6 + $0x48] sm:$0xff]
    %v160 = vld [vmem:[#allocation6 + $0x50] sm:$0xff]
    %v161 = vld [vmem:[#allocation6 + $0x58] sm:$0xff]
    %v162 = vld [vmem:[#allocation6 + $0x60] sm:$0xff]
    %v163 = vld [vmem:[#allocation6 + $0x68] sm:$0xff]
    %v164 = vld [vmem:[#allocation6 + $0x70] sm:$0xff]
    %v165 = vld [vmem:[#allocation6 + $0x78] sm:$0xff]
    %v166 = vld [vmem:[#allocation6 + $0x80] sm:$0xff]
    %v167 = vld [vmem:[#allocation6 + $0x88] sm:$0xff]
    %v168 = vld [vmem:[#allocation6 + $0x90] sm:$0xff]
    %v169 = vld [vmem:[#allocation6 + $0x98] sm:$0xff]
    %v170 = vld [vmem:[#allocation6 + $0xa0] sm:$0xff]
    %v171 = vld [vmem:[#allocation6 + $0xa8] sm:$0xff]
    %v172 = vld [vmem:[#allocation6 + $0xb0] sm:$0xff]
    %v173 = vld [vmem:[#allocation6 + $0xb8] sm:$0xff]
    %v174 = vld [vmem:[#allocation6 + $0xc0] sm:$0xff]
    %v175 = vld [vmem:[#allocation6 + $0xc8] sm:$0xff]
    %v176 = vld [vmem:[#allocation6 + $0xd0] sm:$0xff]
    %v177 = vld [vmem:[#allocation6 + $0xd8] sm:$0xff]
    %v178 = vld [vmem:[#allocation6 + $0xe0] sm:$0xff]
    %v179 = vld [vmem:[#allocation6 + $0xe8] sm:$0xff]
    %v180 = vld [vmem:[#allocation6 + $0xf0] sm:$0xff]
    %v181 = vld [vmem:[#allocation6 + $0xf8] sm:$0xff]
    %v182 = vld [vmem:[#allocation6 + $0x100] sm:$0xff]
    %v183 = vld [vmem:[#allocation6 + $0x108] sm:$0xff]
    %v184 = vld [vmem:[#allocation6 + $0x110] sm:$0xff]
    %v185 = vld [vmem:[#allocation6 + $0x118] sm:$0xff]
    %v186 = vld [vmem:[#allocation6 + $0x120] sm:$0xff]
    %v187 = vld [vmem:[#allocation6 + $0x128] sm:$0xff]
    %v188 = vld [vmem:[#allocation6 + $0x130] sm:$0xff]
    %v189 = vld [vmem:[#allocation6 + $0x138] sm:$0xff]
    %v190 = vld [vmem:[#allocation6 + $0x140] sm:$0xff]
    %v191 = vld [vmem:[#allocation6 + $0x148] sm:$0xff]
    %v192 = vld [vmem:[#allocation6 + $0x150] sm:$0xff]
    %v193 = vld [vmem:[#allocation6 + $0x158] sm:$0xff]
    %v194 = vld [vmem:[#allocation6 + $0x160] sm:$0xff]
    %v195 = vld [vmem:[#allocation6 + $0x168] sm:$0xff]
    %v196 = vld [vmem:[#allocation6 + $0x170] sm:$0xff]
    %v197 = vld [vmem:[#allocation6 + $0x178] sm:$0xff]
    %v198 = vld [vmem:[#allocation6 + $0x180] sm:$0xff]
    %v199 = vld [vmem:[#allocation6 + $0x188] sm:$0xff]
    %v200 = vld [vmem:[#allocation6 + $0x190] sm:$0xff]
    %v201 = vld [vmem:[#allocation6 + $0x198] sm:$0xff]
    %v202 = vld [vmem:[#allocation6 + $0x1a0] sm:$0xff]
    %v203 = vld [vmem:[#allocation6 + $0x1a8] sm:$0xff]
    %v204 = vld [vmem:[#allocation6 + $0x1b0] sm:$0xff]
    %v205 = vld [vmem:[#allocation6 + $0x1b8] sm:$0xff]
    %v206 = vld [vmem:[#allocation6 + $0x1c0] sm:$0xff]
    %v207 = vld [vmem:[#allocation6 + $0x1c8] sm:$0xff]
    %v208 = vld [vmem:[#allocation6 + $0x1d0] sm:$0xff]
    %v209 = vld [vmem:[#allocation6 + $0x1d8] sm:$0xff]
    %v210 = vld [vmem:[#allocation6 + $0x1e0] sm:$0xff]
    %v211 = vld [vmem:[#allocation6 + $0x1e8] sm:$0xff]
    %v212 = vld [vmem:[#allocation6 + $0x1f0] sm:$0xff]
    %v213 = vld [vmem:[#allocation6 + $0x1f8] sm:$0xff]
    %v214 = vld [vmem:[#allocation6 + $0x200] sm:$0xff]
    %v215 = vld [vmem:[#allocation6 + $0x208] sm:$0xff]
    %v216 = vld [vmem:[#allocation6 + $0x210] sm:$0xff]
    %v217 = vld [vmem:[#allocation6 + $0x218] sm:$0xff]
    %v218 = vld [vmem:[#allocation6 + $0x220] sm:$0xff]
    %v219 = vld [vmem:[#allocation6 + $0x228] sm:$0xff]
    %v220 = vld [vmem:[#allocation6 + $0x230] sm:$0xff]
    %v221 = vld [vmem:[#allocation6 + $0x238] sm:$0xff]
    %v222 = vld [vmem:[#allocation6 + $0x240] sm:$0xff]
    %v223 = vld [vmem:[#allocation6 + $0x248] sm:$0xff]
    %v224 = vld [vmem:[#allocation6 + $0x250] sm:$0xff]
    %v225 = vld [vmem:[#allocation6 + $0x258] sm:$0xff]
    %v226 = vld [vmem:[#allocation6 + $0x260] sm:$0xff]
    %v227 = vld [vmem:[#allocation6 + $0x268] sm:$0xff]
    %v228 = vld [vmem:[#allocation6 + $0x270] sm:$0xff]
    %v229 = vld [vmem:[#allocation6 + $0x278] sm:$0xff]
    %v230 = vld [vmem:[#allocation6 + $0x280] sm:$0xff]
    %v231 = vld [vmem:[#allocation6 + $0x288] sm:$0xff]
    %v232 = vld [vmem:[#allocation6 + $0x290] sm:$0xff]
    %v233 = vld [vmem:[#allocation6 + $0x298] sm:$0xff]
    %v234 = vld [vmem:[#allocation6 + $0x2a0] sm:$0xff]
    %v235 = vld [vmem:[#allocation6 + $0x2a8] sm:$0xff]
    %v236 = vld [vmem:[#allocation6 + $0x2b0] sm:$0xff]
    %v237 = vld [vmem:[#allocation6 + $0x2b8] sm:$0xff]
    %v238 = vld [vmem:[#allocation6 + $0x2c0] sm:$0xff]
    %v239 = vld [vmem:[#allocation6 + $0x2c8] sm:$0xff]
    %v240 = vld [vmem:[#allocation6 + $0x2d0] sm:$0xff]
    %v241 = vld [vmem:[#allocation6 + $0x2d8] sm:$0xff]
    %v242 = vld [vmem:[#allocation6 + $0x2e0] sm:$0xff]
    %v243 = vld [vmem:[#allocation6 + $0x2e8] sm:$0xff]
    %v244 = vld [vmem:[#allocation6 + $0x2f0] sm:$0xff]
    %v245 = vld [vmem:[#allocation6 + $0x2f8] sm:$0xff]
    %v246 = vld [vmem:[#allocation6 + $0x300] sm:$0xff]
    %v247 = vld [vmem:[#allocation6 + $0x308] sm:$0xff]
    %v248 = vld [vmem:[#allocation6 + $0x310] sm:$0xff]
    %v249 = vld [vmem:[#allocation6 + $0x318] sm:$0xff]
    %v250 = vld [vmem:[#allocation6 + $0x320] sm:$0xff]
    %v251 = vld [vmem:[#allocation6 + $0x328] sm:$0xff]
    %v252 = vld [vmem:[#allocation6 + $0x330] sm:$0xff]
    %v253 = vld [vmem:[#allocation6 + $0x338] sm:$0xff]
    %v254 = vld [vmem:[#allocation6 + $0x340] sm:$0xff]
    %v255 = vld [vmem:[#allocation6 + $0x348] sm:$0xff]
    %v256 = vld [vmem:[#allocation6 + $0x350] sm:$0xff]
    %v257 = vld [vmem:[#allocation6 + $0x358] sm:$0xff]
    %v258 = vld [vmem:[#allocation6 + $0x360] sm:$0xff]
    %v259 = vld [vmem:[#allocation6 + $0x368] sm:$0xff]
    %v260 = vld [vmem:[#allocation6 + $0x370] sm:$0xff]
    %v261 = vld [vmem:[#allocation6 + $0x378] sm:$0xff]
    %v262 = vld [vmem:[#allocation6 + $0x380] sm:$0xff]
    %v263 = vld [vmem:[#allocation6 + $0x388] sm:$0xff]
    %v264 = vld [vmem:[#allocation6 + $0x390] sm:$0xff]
    %v265 = vld [vmem:[#allocation6 + $0x398] sm:$0xff]
    %v266 = vld [vmem:[#allocation6 + $0x3a0] sm:$0xff]
    %v267 = vld [vmem:[#allocation6 + $0x3a8] sm:$0xff]
    %v268 = vld [vmem:[#allocation6 + $0x3b0] sm:$0xff]
    %v269 = vld [vmem:[#allocation6 + $0x3b8] sm:$0xff]
    %v270 = vld [vmem:[#allocation6 + $0x3c0] sm:$0xff]
    %v271 = vld [vmem:[#allocation6 + $0x3c8] sm:$0xff]
    %v272 = vld [vmem:[#allocation6 + $0x3d0] sm:$0xff]
    %v273 = vld [vmem:[#allocation6 + $0x3d8] sm:$0xff]
    %v274 = vld [vmem:[#allocation6 + $0x3e0] sm:$0xff]
    %v275 = vld [vmem:[#allocation6 + $0x3e8] sm:$0xff]
    %v276 = vld [vmem:[#allocation6 + $0x3f0] sm:$0xff]
    %v277 = vld [vmem:[#allocation6 + $0x3f8] sm:$0xff]
    %v278 = vld [vmem:[#allocation6 + $0x400] sm:$0xff]
    %v279 = vld [vmem:[#allocation6 + $0x408] sm:$0xff]
    %v280 = vld [vmem:[#allocation6 + $0x410] sm:$0xff]
    %v281 = vld [vmem:[#allocation6 + $0x418] sm:$0xff]
    %v282 = vld [vmem:[#allocation6 + $0x420] sm:$0xff]
    %v283 = vld [vmem:[#allocation6 + $0x428] sm:$0xff]
    %v284 = vld [vmem:[#allocation6 + $0x430] sm:$0xff]
    %v285 = vld [vmem:[#allocation6 + $0x438] sm:$0xff]
    %v286 = vld [vmem:[#allocation6 + $0x440] sm:$0xff]
    %v287 = vld [vmem:[#allocation6 + $0x448] sm:$0xff]
    %v288 = vld [vmem:[#allocation6 + $0x450] sm:$0xff]
    %v289 = vld [vmem:[#allocation6 + $0x458] sm:$0xff]
    %v290 = vld [vmem:[#allocation6 + $0x460] sm:$0xff]
    %v291 = vld [vmem:[#allocation6 + $0x468] sm:$0xff]
    %v292 = vld [vmem:[#allocation6 + $0x470] sm:$0xff]
    %v293 = vld [vmem:[#allocation6 + $0x478] sm:$0xff]
    %v294 = vld [vmem:[#allocation6 + $0x480] sm:$0xff]
    %v295 = vld [vmem:[#allocation6 + $0x488] sm:$0xff]
    %v296 = vld [vmem:[#allocation6 + $0x490] sm:$0xff]
    %v297 = vld [vmem:[#allocation6 + $0x498] sm:$0xff]
    %v298 = vld [vmem:[#allocation6 + $0x4a0] sm:$0xff]
    %v299 = vld [vmem:[#allocation6 + $0x4a8] sm:$0xff]
    %v300 = vld [vmem:[#allocation6 + $0x4b0] sm:$0xff]
    %v301 = vld [vmem:[#allocation6 + $0x4b8] sm:$0xff]
    %v302 = vld [vmem:[#allocation6 + $0x4c0] sm:$0xff]
    %v303 = vld [vmem:[#allocation6 + $0x4c8] sm:$0xff]
    %v304 = vld [vmem:[#allocation6 + $0x4d0] sm:$0xff]
    %v305 = vld [vmem:[#allocation6 + $0x4d8] sm:$0xff]
    %v306 = vld [vmem:[#allocation6 + $0x4e0] sm:$0xff]
    %v307 = vld [vmem:[#allocation6 + $0x4e8] sm:$0xff]
    %v308 = vld [vmem:[#allocation6 + $0x4f0] sm:$0xff]
    %v309 = vld [vmem:[#allocation6 + $0x4f8] sm:$0xff]
    %v310 = vld [vmem:[#allocation6 + $0x500] sm:$0xff]
    %v311 = vld [vmem:[#allocation6 + $0x508] sm:$0xff]
    %v312 = vld [vmem:[#allocation6 + $0x510] sm:$0xff]
    %v313 = vld [vmem:[#allocation6 + $0x518] sm:$0xff]
    %v314 = vld [vmem:[#allocation6 + $0x520] sm:$0xff]
    %v315 = vld [vmem:[#allocation6 + $0x528] sm:$0xff]
    %v316 = vld [vmem:[#allocation6 + $0x530] sm:$0xff]
    %v317 = vld [vmem:[#allocation6 + $0x538] sm:$0xff]
    %v318 = vld [vmem:[#allocation6 + $0x540] sm:$0xff]
    %v319 = vld [vmem:[#allocation6 + $0x548] sm:$0xff]
    %v320 = vld [vmem:[#allocation6 + $0x550] sm:$0xff]
    %v321 = vld [vmem:[#allocation6 + $0x558] sm:$0xff]
    %v322 = vld [vmem:[#allocation6 + $0x560] sm:$0xff]
    %v323 = vld [vmem:[#allocation6 + $0x568] sm:$0xff]
    %v324 = vld [vmem:[#allocation6 + $0x570] sm:$0xff]
    %v325 = vld [vmem:[#allocation6 + $0x578] sm:$0xff]
    %v326 = vld [vmem:[#allocation6 + $0x580] sm:$0xff]
    %v327 = vld [vmem:[#allocation6 + $0x588] sm:$0xff]
    %v328 = vld [vmem:[#allocation6 + $0x590] sm:$0xff]
    %v329 = vld [vmem:[#allocation6 + $0x598] sm:$0xff]
    %v330 = vld [vmem:[#allocation6 + $0x5a0] sm:$0xff]
    %v331 = vld [vmem:[#allocation6 + $0x5a8] sm:$0xff]
    %v332 = vld [vmem:[#allocation6 + $0x5b0] sm:$0xff]
    %v333 = vld [vmem:[#allocation6 + $0x5b8] sm:$0xff]
    %v334 = vld [vmem:[#allocation6 + $0x5c0] sm:$0xff]
    %v335 = vld [vmem:[#allocation6 + $0x5c8] sm:$0xff]
    %v336 = vld [vmem:[#allocation6 + $0x5d0] sm:$0xff]
    %v337 = vld [vmem:[#allocation6 + $0x5d8] sm:$0xff]
    %v338 = vld [vmem:[#allocation6 + $0x5e0] sm:$0xff]
    %v339 = vld [vmem:[#allocation6 + $0x5e8] sm:$0xff]
    %v340 = vld [vmem:[#allocation6 + $0x5f0] sm:$0xff]
    %v341 = vld [vmem:[#allocation6 + $0x5f8] sm:$0xff]
    %v342 = vld [vmem:[#allocation6 + $0x600] sm:$0xff]
    %v343 = vld [vmem:[#allocation6 + $0x608] sm:$0xff]
    %v344 = vld [vmem:[#allocation6 + $0x610] sm:$0xff]
    %v345 = vld [vmem:[#allocation6 + $0x618] sm:$0xff]
    %v346 = vld [vmem:[#allocation6 + $0x620] sm:$0xff]
    %v347 = vld [vmem:[#allocation6 + $0x628] sm:$0xff]
    %v348 = vld [vmem:[#allocation6 + $0x630] sm:$0xff]
    %v349 = vld [vmem:[#allocation6 + $0x638] sm:$0xff]
    %v350 = vld [vmem:[#allocation6 + $0x640] sm:$0xff]
    %v351 = vld [vmem:[#allocation6 + $0x648] sm:$0xff]
    %v352 = vld [vmem:[#allocation6 + $0x650] sm:$0xff]
    %v353 = vld [vmem:[#allocation6 + $0x658] sm:$0xff]
    %v354 = vld [vmem:[#allocation6 + $0x660] sm:$0xff]
    %v355 = vld [vmem:[#allocation6 + $0x668] sm:$0xff]
    %v356 = vld [vmem:[#allocation6 + $0x670] sm:$0xff]
    %v357 = vld [vmem:[#allocation6 + $0x678] sm:$0xff]
    %v358 = vld [vmem:[#allocation6 + $0x680] sm:$0xff]
    %v359 = vld [vmem:[#allocation6 + $0x688] sm:$0xff]
    %v360 = vld [vmem:[#allocation6 + $0x690] sm:$0xff]
    %v361 = vld [vmem:[#allocation6 + $0x698] sm:$0xff]
    %v362 = vld [vmem:[#allocation6 + $0x6a0] sm:$0xff]
    %v363 = vld [vmem:[#allocation6 + $0x6a8] sm:$0xff]
    %v364 = vld [vmem:[#allocation6 + $0x6b0] sm:$0xff]
    %v365 = vld [vmem:[#allocation6 + $0x6b8] sm:$0xff]
    %v366 = vld [vmem:[#allocation6 + $0x6c0] sm:$0xff]
    %v367 = vld [vmem:[#allocation6 + $0x6c8] sm:$0xff]
    %v368 = vld [vmem:[#allocation6 + $0x6d0] sm:$0xff]
    %v369 = vld [vmem:[#allocation6 + $0x6d8] sm:$0xff]
    %v370 = vld [vmem:[#allocation6 + $0x6e0] sm:$0xff]
    %v371 = vld [vmem:[#allocation6 + $0x6e8] sm:$0xff]
    %v372 = vld [vmem:[#allocation6 + $0x6f0] sm:$0xff]
    %v373 = vld [vmem:[#allocation6 + $0x6f8] sm:$0xff]
    %v374 = vld [vmem:[#allocation8] sm:$0xf]
    %v376 = vperm.slane %v374, 0
    %v377 = vperm.slane %v374, 1
    %v378 = vperm.slane %v374, 2
    %v379 = vperm.slane %v374, 3
    %v388 = vunpack.c.l.b16 %v146
    %v389 = vunpack.c.h.b16 %v146
    %v390 = vunpack.c.l.b16 %v147
    %v391 = vunpack.c.h.b16 %v147
    %v392 = vunpack.c.l.b16 %v148
    %v393 = vunpack.c.h.b16 %v148
    %v394 = vunpack.c.l.b16 %v149
    %v395 = vpack.c.b16 %v388, %v388
    %v396 = vpack.c.b16 %v389, %v389
    %v397 = vpack.c.b16 %v390, %v390
    %v398 = vpack.c.b16 %v391, %v391
    %v399 = vpack.c.b16 %v392, %v392
    %v400 = vpack.c.b16 %v393, %v393
    %v401 = vpack.c.b16 %v394, %v394
    %v633 = vunpack.c.l.b16 %v150
    %v634 = vunpack.c.h.b16 %v150
    %v635 = vunpack.c.l.b16 %v151
    %v636 = vunpack.c.h.b16 %v151
    %v637 = vunpack.c.l.b16 %v152
    %v638 = vunpack.c.h.b16 %v152
    %v639 = vunpack.c.l.b16 %v153
    %v640 = vunpack.c.h.b16 %v153
    %v641 = vunpack.c.l.b16 %v154
    %v642 = vunpack.c.h.b16 %v154
    %v643 = vunpack.c.l.b16 %v155
    %v644 = vunpack.c.h.b16 %v155
    %v645 = vunpack.c.l.b16 %v156
    %v646 = vunpack.c.h.b16 %v156
    %v647 = vunpack.c.l.b16 %v157
    %v648 = vunpack.c.h.b16 %v157
    %v649 = vunpack.c.l.b16 %v158
    %v650 = vunpack.c.h.b16 %v158
    %v651 = vunpack.c.l.b16 %v159
    %v652 = vunpack.c.h.b16 %v159
    %v653 = vunpack.c.l.b16 %v160
    %v654 = vunpack.c.h.b16 %v160
    %v655 = vunpack.c.l.b16 %v161
    %v656 = vunpack.c.h.b16 %v161
    %v657 = vunpack.c.l.b16 %v162
    %v658 = vunpack.c.h.b16 %v162
    %v659 = vunpack.c.l.b16 %v163
    %v660 = vunpack.c.h.b16 %v163
    %v661 = vunpack.c.l.b16 %v164
    %v662 = vunpack.c.h.b16 %v164
    %v663 = vunpack.c.l.b16 %v165
    %v664 = vunpack.c.h.b16 %v165
    %v665 = vunpack.c.l.b16 %v166
    %v666 = vunpack.c.h.b16 %v166
    %v667 = vunpack.c.l.b16 %v167
    %v668 = vunpack.c.h.b16 %v167
    %v669 = vunpack.c.l.b16 %v168
    %v670 = vunpack.c.h.b16 %v168
    %v671 = vunpack.c.l.b16 %v169
    %v672 = vunpack.c.h.b16 %v169
    %v673 = vunpack.c.l.b16 %v170
    %v674 = vunpack.c.h.b16 %v170
    %v675 = vunpack.c.l.b16 %v171
    %v676 = vunpack.c.h.b16 %v171
    %v677 = vunpack.c.l.b16 %v172
    %v678 = vunpack.c.h.b16 %v172
    %v679 = vunpack.c.l.b16 %v173
    %v680 = vunpack.c.h.b16 %v173
    %v681 = vunpack.c.l.b16 %v174
    %v682 = vunpack.c.h.b16 %v174
    %v683 = vunpack.c.l.b16 %v175
    %v684 = vunpack.c.h.b16 %v175
    %v685 = vunpack.c.l.b16 %v176
    %v686 = vunpack.c.h.b16 %v176
    %v687 = vunpack.c.l.b16 %v177
    %v688 = vunpack.c.h.b16 %v177
    %v689 = vunpack.c.l.b16 %v178
    %v690 = vunpack.c.h.b16 %v178
    %v691 = vunpack.c.l.b16 %v179
    %v692 = vunpack.c.h.b16 %v179
    %v693 = vunpack.c.l.b16 %v180
    %v694 = vunpack.c.h.b16 %v180
    %v695 = vunpack.c.l.b16 %v181
    %v696 = vunpack.c.h.b16 %v181
    %v697 = vunpack.c.l.b16 %v182
    %v698 = vunpack.c.h.b16 %v182
    %v699 = vunpack.c.l.b16 %v183
    %v700 = vunpack.c.h.b16 %v183
    %v701 = vunpack.c.l.b16 %v184
    %v702 = vunpack.c.h.b16 %v184
    %v703 = vunpack.c.l.b16 %v185
    %v704 = vunpack.c.h.b16 %v185
    %v705 = vunpack.c.l.b16 %v186
    %v706 = vunpack.c.h.b16 %v186
    %v707 = vunpack.c.l.b16 %v187
    %v708 = vunpack.c.h.b16 %v187
    %v709 = vunpack.c.l.b16 %v188
    %v710 = vunpack.c.h.b16 %v188
    %v711 = vunpack.c.l.b16 %v189
    %v712 = vunpack.c.h.b16 %v189
    %v713 = vunpack.c.l.b16 %v190
    %v714 = vunpack.c.h.b16 %v190
    %v715 = vunpack.c.l.b16 %v191
    %v716 = vunpack.c.h.b16 %v191
    %v717 = vunpack.c.l.b16 %v192
    %v718 = vunpack.c.h.b16 %v192
    %v719 = vunpack.c.l.b16 %v193
    %v720 = vunpack.c.h.b16 %v193
    %v721 = vunpack.c.l.b16 %v194
    %v722 = vunpack.c.h.b16 %v194
    %v723 = vunpack.c.l.b16 %v195
    %v724 = vunpack.c.h.b16 %v195
    %v725 = vunpack.c.l.b16 %v196
    %v726 = vunpack.c.h.b16 %v196
    %v727 = vunpack.c.l.b16 %v197
    %v728 = vunpack.c.h.b16 %v197
    %v729 = vunpack.c.l.b16 %v198
    %v730 = vunpack.c.h.b16 %v198
    %v731 = vunpack.c.l.b16 %v199
    %v732 = vunpack.c.h.b16 %v199
    %v733 = vunpack.c.l.b16 %v200
    %v734 = vunpack.c.h.b16 %v200
    %v735 = vunpack.c.l.b16 %v201
    %v736 = vunpack.c.h.b16 %v201
    %v737 = vunpack.c.l.b16 %v202
    %v738 = vunpack.c.h.b16 %v202
    %v739 = vunpack.c.l.b16 %v203
    %v740 = vunpack.c.h.b16 %v203
    %v741 = vunpack.c.l.b16 %v204
    %v742 = vunpack.c.h.b16 %v204
    %v743 = vunpack.c.l.b16 %v205
    %v744 = vunpack.c.h.b16 %v205
    %v745 = vunpack.c.l.b16 %v206
    %v746 = vunpack.c.h.b16 %v206
    %v747 = vunpack.c.l.b16 %v207
    %v748 = vunpack.c.h.b16 %v207
    %v749 = vunpack.c.l.b16 %v208
    %v750 = vunpack.c.h.b16 %v208
    %v751 = vunpack.c.l.b16 %v209
    %v752 = vunpack.c.h.b16 %v209
    %v753 = vunpack.c.l.b16 %v210
    %v754 = vunpack.c.h.b16 %v210
    %v755 = vunpack.c.l.b16 %v211
    %v756 = vunpack.c.h.b16 %v211
    %v757 = vunpack.c.l.b16 %v212
    %v758 = vunpack.c.h.b16 %v212
    %v759 = vunpack.c.l.b16 %v213
    %v760 = vunpack.c.h.b16 %v213
    %v761 = vunpack.c.l.b16 %v214
    %v762 = vunpack.c.h.b16 %v214
    %v763 = vunpack.c.l.b16 %v215
    %v764 = vunpack.c.h.b16 %v215
    %v765 = vunpack.c.l.b16 %v216
    %v766 = vunpack.c.h.b16 %v216
    %v767 = vunpack.c.l.b16 %v217
    %v768 = vunpack.c.h.b16 %v217
    %v769 = vunpack.c.l.b16 %v218
    %v770 = vunpack.c.h.b16 %v218
    %v771 = vunpack.c.l.b16 %v219
    %v772 = vunpack.c.h.b16 %v219
    %v773 = vunpack.c.l.b16 %v220
    %v774 = vunpack.c.h.b16 %v220
    %v775 = vunpack.c.l.b16 %v221
    %v776 = vunpack.c.h.b16 %v221
    %v777 = vunpack.c.l.b16 %v222
    %v778 = vunpack.c.h.b16 %v222
    %v779 = vunpack.c.l.b16 %v223
    %v780 = vunpack.c.h.b16 %v223
    %v781 = vunpack.c.l.b16 %v224
    %v782 = vunpack.c.h.b16 %v224
    %v783 = vunpack.c.l.b16 %v225
    %v784 = vunpack.c.h.b16 %v225
    %v785 = vunpack.c.l.b16 %v226
    %v786 = vunpack.c.h.b16 %v226
    %v787 = vunpack.c.l.b16 %v227
    %v788 = vunpack.c.h.b16 %v227
    %v789 = vunpack.c.l.b16 %v228
    %v790 = vunpack.c.h.b16 %v228
    %v791 = vunpack.c.l.b16 %v229
    %v792 = vunpack.c.h.b16 %v229
    %v793 = vunpack.c.l.b16 %v230
    %v794 = vunpack.c.h.b16 %v230
    %v795 = vunpack.c.l.b16 %v231
    %v796 = vunpack.c.h.b16 %v231
    %v797 = vunpack.c.l.b16 %v232
    %v798 = vunpack.c.h.b16 %v232
    %v799 = vunpack.c.l.b16 %v233
    %v800 = vunpack.c.h.b16 %v233
    %v801 = vunpack.c.l.b16 %v234
    %v802 = vunpack.c.h.b16 %v234
    %v803 = vunpack.c.l.b16 %v235
    %v804 = vunpack.c.h.b16 %v235
    %v805 = vunpack.c.l.b16 %v236
    %v806 = vunpack.c.h.b16 %v236
    %v807 = vunpack.c.l.b16 %v237
    %v808 = vunpack.c.h.b16 %v237
    %v809 = vunpack.c.l.b16 %v238
    %v810 = vunpack.c.h.b16 %v238
    %v811 = vunpack.c.l.b16 %v239
    %v812 = vunpack.c.h.b16 %v239
    %v813 = vunpack.c.l.b16 %v240
    %v814 = vunpack.c.h.b16 %v240
    %v815 = vunpack.c.l.b16 %v241
    %v816 = vunpack.c.h.b16 %v241
    %v817 = vunpack.c.l.b16 %v242
    %v818 = vunpack.c.h.b16 %v242
    %v819 = vunpack.c.l.b16 %v243
    %v820 = vunpack.c.h.b16 %v243
    %v821 = vunpack.c.l.b16 %v244
    %v822 = vunpack.c.h.b16 %v244
    %v823 = vunpack.c.l.b16 %v245
    %v824 = vunpack.c.h.b16 %v245
    %v825 = vunpack.c.l.b16 %v246
    %v826 = vunpack.c.h.b16 %v246
    %v827 = vunpack.c.l.b16 %v247
    %v828 = vunpack.c.h.b16 %v247
    %v829 = vunpack.c.l.b16 %v248
    %v830 = vunpack.c.h.b16 %v248
    %v831 = vunpack.c.l.b16 %v249
    %v832 = vunpack.c.h.b16 %v249
    %v833 = vunpack.c.l.b16 %v250
    %v834 = vunpack.c.h.b16 %v250
    %v835 = vunpack.c.l.b16 %v251
    %v836 = vunpack.c.h.b16 %v251
    %v837 = vunpack.c.l.b16 %v252
    %v838 = vunpack.c.h.b16 %v252
    %v839 = vunpack.c.l.b16 %v253
    %v840 = vunpack.c.h.b16 %v253
    %v841 = vunpack.c.l.b16 %v254
    %v842 = vunpack.c.h.b16 %v254
    %v843 = vunpack.c.l.b16 %v255
    %v844 = vunpack.c.h.b16 %v255
    %v845 = vunpack.c.l.b16 %v256
    %v846 = vunpack.c.h.b16 %v256
    %v847 = vunpack.c.l.b16 %v257
    %v848 = vunpack.c.h.b16 %v257
    %v849 = vunpack.c.l.b16 %v258
    %v850 = vunpack.c.h.b16 %v258
    %v851 = vunpack.c.l.b16 %v259
    %v852 = vunpack.c.h.b16 %v259
    %v853 = vunpack.c.l.b16 %v260
    %v854 = vunpack.c.h.b16 %v260
    %v855 = vunpack.c.l.b16 %v261
    %v856 = vunpack.c.h.b16 %v261
    %v857 = vunpack.c.l.b16 %v262
    %v858 = vunpack.c.h.b16 %v262
    %v859 = vunpack.c.l.b16 %v263
    %v860 = vunpack.c.h.b16 %v263
    %v861 = vunpack.c.l.b16 %v264
    %v862 = vunpack.c.h.b16 %v264
    %v863 = vunpack.c.l.b16 %v265
    %v864 = vunpack.c.h.b16 %v265
    %v865 = vunpack.c.l.b16 %v266
    %v866 = vunpack.c.h.b16 %v266
    %v867 = vunpack.c.l.b16 %v267
    %v868 = vunpack.c.h.b16 %v267
    %v869 = vunpack.c.l.b16 %v268
    %v870 = vunpack.c.h.b16 %v268
    %v871 = vunpack.c.l.b16 %v269
    %v872 = vunpack.c.h.b16 %v269
    %v873 = vunpack.c.l.b16 %v270
    %v874 = vunpack.c.h.b16 %v270
    %v875 = vunpack.c.l.b16 %v271
    %v876 = vunpack.c.h.b16 %v271
    %v877 = vunpack.c.l.b16 %v272
    %v878 = vunpack.c.h.b16 %v272
    %v879 = vunpack.c.l.b16 %v273
    %v880 = vunpack.c.h.b16 %v273
    %v881 = vunpack.c.l.b16 %v274
    %v882 = vunpack.c.h.b16 %v274
    %v883 = vunpack.c.l.b16 %v275
    %v884 = vunpack.c.h.b16 %v275
    %v885 = vunpack.c.l.b16 %v276
    %v886 = vunpack.c.h.b16 %v276
    %v887 = vunpack.c.l.b16 %v277
    %v888 = vunpack.c.h.b16 %v277
    %v889 = vunpack.c.l.b16 %v278
    %v890 = vunpack.c.h.b16 %v278
    %v891 = vunpack.c.l.b16 %v279
    %v892 = vunpack.c.h.b16 %v279
    %v893 = vunpack.c.l.b16 %v280
    %v894 = vunpack.c.h.b16 %v280
    %v895 = vunpack.c.l.b16 %v281
    %v896 = vunpack.c.h.b16 %v281
    %v897 = vunpack.c.l.b16 %v282
    %v898 = vunpack.c.h.b16 %v282
    %v899 = vunpack.c.l.b16 %v283
    %v900 = vunpack.c.h.b16 %v283
    %v901 = vunpack.c.l.b16 %v284
    %v902 = vunpack.c.h.b16 %v284
    %v903 = vunpack.c.l.b16 %v285
    %v904 = vunpack.c.h.b16 %v285
    %v905 = vunpack.c.l.b16 %v286
    %v906 = vunpack.c.h.b16 %v286
    %v907 = vunpack.c.l.b16 %v287
    %v908 = vunpack.c.h.b16 %v287
    %v909 = vunpack.c.l.b16 %v288
    %v910 = vunpack.c.h.b16 %v288
    %v911 = vunpack.c.l.b16 %v289
    %v912 = vunpack.c.h.b16 %v289
    %v913 = vunpack.c.l.b16 %v290
    %v914 = vunpack.c.h.b16 %v290
    %v915 = vunpack.c.l.b16 %v291
    %v916 = vunpack.c.h.b16 %v291
    %v917 = vunpack.c.l.b16 %v292
    %v918 = vunpack.c.h.b16 %v292
    %v919 = vunpack.c.l.b16 %v293
    %v920 = vunpack.c.h.b16 %v293
    %v921 = vunpack.c.l.b16 %v294
    %v922 = vunpack.c.h.b16 %v294
    %v923 = vunpack.c.l.b16 %v295
    %v924 = vunpack.c.h.b16 %v295
    %v925 = vunpack.c.l.b16 %v296
    %v926 = vunpack.c.h.b16 %v296
    %v927 = vunpack.c.l.b16 %v297
    %v928 = vunpack.c.h.b16 %v297
    %v929 = vunpack.c.l.b16 %v298
    %v930 = vunpack.c.h.b16 %v298
    %v931 = vunpack.c.l.b16 %v299
    %v932 = vunpack.c.h.b16 %v299
    %v933 = vunpack.c.l.b16 %v300
    %v934 = vunpack.c.h.b16 %v300
    %v935 = vunpack.c.l.b16 %v301
    %v936 = vunpack.c.h.b16 %v301
    %v937 = vunpack.c.l.b16 %v302
    %v938 = vunpack.c.h.b16 %v302
    %v939 = vunpack.c.l.b16 %v303
    %v940 = vunpack.c.h.b16 %v303
    %v941 = vunpack.c.l.b16 %v304
    %v942 = vunpack.c.h.b16 %v304
    %v943 = vunpack.c.l.b16 %v305
    %v944 = vunpack.c.h.b16 %v305
    %v945 = vunpack.c.l.b16 %v306
    %v946 = vunpack.c.h.b16 %v306
    %v947 = vunpack.c.l.b16 %v307
    %v948 = vunpack.c.h.b16 %v307
    %v949 = vunpack.c.l.b16 %v308
    %v950 = vunpack.c.h.b16 %v308
    %v951 = vunpack.c.l.b16 %v309
    %v952 = vunpack.c.h.b16 %v309
    %v953 = vunpack.c.l.b16 %v310
    %v954 = vunpack.c.h.b16 %v310
    %v955 = vunpack.c.l.b16 %v311
    %v956 = vunpack.c.h.b16 %v311
    %v957 = vunpack.c.l.b16 %v312
    %v958 = vunpack.c.h.b16 %v312
    %v959 = vunpack.c.l.b16 %v313
    %v960 = vunpack.c.h.b16 %v313
    %v961 = vunpack.c.l.b16 %v314
    %v962 = vunpack.c.h.b16 %v314
    %v963 = vunpack.c.l.b16 %v315
    %v964 = vunpack.c.h.b16 %v315
    %v965 = vunpack.c.l.b16 %v316
    %v966 = vunpack.c.h.b16 %v316
    %v967 = vunpack.c.l.b16 %v317
    %v968 = vunpack.c.h.b16 %v317
    %v969 = vunpack.c.l.b16 %v318
    %v970 = vunpack.c.h.b16 %v318
    %v971 = vunpack.c.l.b16 %v319
    %v972 = vunpack.c.h.b16 %v319
    %v973 = vunpack.c.l.b16 %v320
    %v974 = vunpack.c.h.b16 %v320
    %v975 = vunpack.c.l.b16 %v321
    %v976 = vunpack.c.h.b16 %v321
    %v977 = vunpack.c.l.b16 %v322
    %v978 = vunpack.c.h.b16 %v322
    %v979 = vunpack.c.l.b16 %v323
    %v980 = vunpack.c.h.b16 %v323
    %v981 = vunpack.c.l.b16 %v324
    %v982 = vunpack.c.h.b16 %v324
    %v983 = vunpack.c.l.b16 %v325
    %v984 = vunpack.c.h.b16 %v325
    %v985 = vunpack.c.l.b16 %v326
    %v986 = vunpack.c.h.b16 %v326
    %v987 = vunpack.c.l.b16 %v327
    %v988 = vunpack.c.h.b16 %v327
    %v989 = vunpack.c.l.b16 %v328
    %v990 = vunpack.c.h.b16 %v328
    %v991 = vunpack.c.l.b16 %v329
    %v992 = vunpack.c.h.b16 %v329
    %v993 = vunpack.c.l.b16 %v330
    %v994 = vunpack.c.h.b16 %v330
    %v995 = vunpack.c.l.b16 %v331
    %v996 = vunpack.c.h.b16 %v331
    %v997 = vunpack.c.l.b16 %v332
    %v998 = vunpack.c.h.b16 %v332
    %v999 = vunpack.c.l.b16 %v333
    %v1000 = vunpack.c.h.b16 %v333
    %v1001 = vunpack.c.l.b16 %v334
    %v1002 = vunpack.c.h.b16 %v334
    %v1003 = vunpack.c.l.b16 %v335
    %v1004 = vunpack.c.h.b16 %v335
    %v1005 = vunpack.c.l.b16 %v336
    %v1006 = vunpack.c.h.b16 %v336
    %v1007 = vunpack.c.l.b16 %v337
    %v1008 = vunpack.c.h.b16 %v337
    %v1009 = vunpack.c.l.b16 %v338
    %v1010 = vunpack.c.h.b16 %v338
    %v1011 = vunpack.c.l.b16 %v339
    %v1012 = vunpack.c.h.b16 %v339
    %v1013 = vunpack.c.l.b16 %v340
    %v1014 = vunpack.c.h.b16 %v340
    %v1015 = vunpack.c.l.b16 %v341
    %v1016 = vunpack.c.h.b16 %v341
    %v1017 = vunpack.c.l.b16 %v342
    %v1018 = vunpack.c.h.b16 %v342
    %v1019 = vunpack.c.l.b16 %v343
    %v1020 = vunpack.c.h.b16 %v343
    %v1021 = vunpack.c.l.b16 %v344
    %v1022 = vunpack.c.h.b16 %v344
    %v1023 = vunpack.c.l.b16 %v345
    %v1024 = vunpack.c.h.b16 %v345
    %v1025 = vunpack.c.l.b16 %v346
    %v1026 = vunpack.c.h.b16 %v346
    %v1027 = vunpack.c.l.b16 %v347
    %v1028 = vunpack.c.h.b16 %v347
    %v1029 = vunpack.c.l.b16 %v348
    %v1030 = vunpack.c.h.b16 %v348
    %v1031 = vunpack.c.l.b16 %v349
    %v1032 = vunpack.c.h.b16 %v349
    %v1033 = vunpack.c.l.b16 %v350
    %v1034 = vunpack.c.h.b16 %v350
    %v1035 = vunpack.c.l.b16 %v351
    %v1036 = vunpack.c.h.b16 %v351
    %v1037 = vunpack.c.l.b16 %v352
    %v1038 = vunpack.c.h.b16 %v352
    %v1039 = vunpack.c.l.b16 %v353
    %v1040 = vunpack.c.h.b16 %v353
    %v1041 = vunpack.c.l.b16 %v354
    %v1042 = vunpack.c.h.b16 %v354
    %v1043 = vunpack.c.l.b16 %v355
    %v1044 = vunpack.c.h.b16 %v355
    %v1045 = vunpack.c.l.b16 %v356
    %v1046 = vunpack.c.h.b16 %v356
    %v1047 = vunpack.c.l.b16 %v357
    %v1048 = vunpack.c.h.b16 %v357
    %v1049 = vunpack.c.l.b16 %v358
    %v1050 = vunpack.c.h.b16 %v358
    %v1051 = vunpack.c.l.b16 %v359
    %v1052 = vunpack.c.h.b16 %v359
    %v1053 = vunpack.c.l.b16 %v360
    %v1054 = vunpack.c.h.b16 %v360
    %v1055 = vunpack.c.l.b16 %v361
    %v1056 = vunpack.c.h.b16 %v361
    %v1057 = vunpack.c.l.b16 %v362
    %v1058 = vunpack.c.h.b16 %v362
    %v1059 = vunpack.c.l.b16 %v363
    %v1060 = vunpack.c.h.b16 %v363
    %v1061 = vunpack.c.l.b16 %v364
    %v1062 = vunpack.c.h.b16 %v364
    %v1063 = vunpack.c.l.b16 %v365
    %v1064 = vunpack.c.h.b16 %v365
    %v1065 = vunpack.c.l.b16 %v366
    %v1066 = vunpack.c.h.b16 %v366
    %v1067 = vunpack.c.l.b16 %v367
    %v1068 = vunpack.c.h.b16 %v367
    %v1069 = vunpack.c.l.b16 %v368
    %v1070 = vunpack.c.h.b16 %v368
    %v1071 = vunpack.c.l.b16 %v369
    %v1072 = vunpack.c.h.b16 %v369
    %v1073 = vunpack.c.l.b16 %v370
    %v1074 = vunpack.c.h.b16 %v370
    %v1075 = vunpack.c.l.b16 %v371
    %v1076 = vunpack.c.h.b16 %v371
    %v1077 = vunpack.c.l.b16 %v372
    %v1078 = vunpack.c.h.b16 %v372
    %v1079 = vunpack.c.l.b16 %v373
    %v1080 = vunpack.c.h.b16 %v373
    %v1081 = vpack.c.b16 %v637, %v633
    %v1082 = vpack.c.b16 %v638, %v634
    %v1083 = vpack.c.b16 %v639, %v635
    %v1084 = vpack.c.b16 %v640, %v636
    %v1085 = vpack.c.b16 %v645, %v641
    %v1086 = vpack.c.b16 %v646, %v642
    %v1087 = vpack.c.b16 %v647, %v643
    %v1088 = vpack.c.b16 %v648, %v644
    %v1089 = vpack.c.b16 %v653, %v649
    %v1090 = vpack.c.b16 %v654, %v650
    %v1091 = vpack.c.b16 %v655, %v651
    %v1092 = vpack.c.b16 %v656, %v652
    %v1093 = vpack.c.b16 %v661, %v657
    %v1094 = vpack.c.b16 %v662, %v658
    %v1095 = vpack.c.b16 %v663, %v659
    %v1096 = vpack.c.b16 %v664, %v660
    %v1097 = vpack.c.b16 %v669, %v665
    %v1098 = vpack.c.b16 %v670, %v666
    %v1099 = vpack.c.b16 %v671, %v667
    %v1100 = vpack.c.b16 %v672, %v668
    %v1101 = vpack.c.b16 %v677, %v673
    %v1102 = vpack.c.b16 %v678, %v674
    %v1103 = vpack.c.b16 %v679, %v675
    %v1104 = vpack.c.b16 %v680, %v676
    %v1105 = vpack.c.b16 %v685, %v681
    %v1106 = vpack.c.b16 %v686, %v682
    %v1107 = vpack.c.b16 %v687, %v683
    %v1108 = vpack.c.b16 %v688, %v684
    %v1109 = vpack.c.b16 %v693, %v689
    %v1110 = vpack.c.b16 %v694, %v690
    %v1111 = vpack.c.b16 %v695, %v691
    %v1112 = vpack.c.b16 %v696, %v692
    %v1113 = vpack.c.b16 %v701, %v697
    %v1114 = vpack.c.b16 %v702, %v698
    %v1115 = vpack.c.b16 %v703, %v699
    %v1116 = vpack.c.b16 %v704, %v700
    %v1117 = vpack.c.b16 %v709, %v705
    %v1118 = vpack.c.b16 %v710, %v706
    %v1119 = vpack.c.b16 %v711, %v707
    %v1120 = vpack.c.b16 %v712, %v708
    %v1121 = vpack.c.b16 %v717, %v713
    %v1122 = vpack.c.b16 %v718, %v714
    %v1123 = vpack.c.b16 %v719, %v715
    %v1124 = vpack.c.b16 %v720, %v716
    %v1125 = vpack.c.b16 %v725, %v721
    %v1126 = vpack.c.b16 %v726, %v722
    %v1127 = vpack.c.b16 %v727, %v723
    %v1128 = vpack.c.b16 %v728, %v724
    %v1129 = vpack.c.b16 %v733, %v729
    %v1130 = vpack.c.b16 %v734, %v730
    %v1131 = vpack.c.b16 %v735, %v731
    %v1132 = vpack.c.b16 %v736, %v732
    %v1133 = vpack.c.b16 %v741, %v737
    %v1134 = vpack.c.b16 %v742, %v738
    %v1135 = vpack.c.b16 %v743, %v739
    %v1136 = vpack.c.b16 %v744, %v740
    %v1137 = vpack.c.b16 %v749, %v745
    %v1138 = vpack.c.b16 %v750, %v746
    %v1139 = vpack.c.b16 %v751, %v747
    %v1140 = vpack.c.b16 %v752, %v748
    %v1141 = vpack.c.b16 %v757, %v753
    %v1142 = vpack.c.b16 %v758, %v754
    %v1143 = vpack.c.b16 %v759, %v755
    %v1144 = vpack.c.b16 %v760, %v756
    %v1145 = vpack.c.b16 %v765, %v761
    %v1146 = vpack.c.b16 %v766, %v762
    %v1147 = vpack.c.b16 %v767, %v763
    %v1148 = vpack.c.b16 %v768, %v764
    %v1149 = vpack.c.b16 %v773, %v769
    %v1150 = vpack.c.b16 %v774, %v770
    %v1151 = vpack.c.b16 %v775, %v771
    %v1152 = vpack.c.b16 %v776, %v772
    %v1153 = vpack.c.b16 %v781, %v777
    %v1154 = vpack.c.b16 %v782, %v778
    %v1155 = vpack.c.b16 %v783, %v779
    %v1156 = vpack.c.b16 %v784, %v780
    %v1157 = vpack.c.b16 %v789, %v785
    %v1158 = vpack.c.b16 %v790, %v786
    %v1159 = vpack.c.b16 %v791, %v787
    %v1160 = vpack.c.b16 %v792, %v788
    %v1161 = vpack.c.b16 %v797, %v793
    %v1162 = vpack.c.b16 %v798, %v794
    %v1163 = vpack.c.b16 %v799, %v795
    %v1164 = vpack.c.b16 %v800, %v796
    %v1165 = vpack.c.b16 %v805, %v801
    %v1166 = vpack.c.b16 %v806, %v802
    %v1167 = vpack.c.b16 %v807, %v803
    %v1168 = vpack.c.b16 %v808, %v804
    %v1169 = vpack.c.b16 %v813, %v809
    %v1170 = vpack.c.b16 %v814, %v810
    %v1171 = vpack.c.b16 %v815, %v811
    %v1172 = vpack.c.b16 %v816, %v812
    %v1173 = vpack.c.b16 %v821, %v817
    %v1174 = vpack.c.b16 %v822, %v818
    %v1175 = vpack.c.b16 %v823, %v819
    %v1176 = vpack.c.b16 %v824, %v820
    %v1177 = vpack.c.b16 %v829, %v825
    %v1178 = vpack.c.b16 %v830, %v826
    %v1179 = vpack.c.b16 %v831, %v827
    %v1180 = vpack.c.b16 %v832, %v828
    %v1181 = vpack.c.b16 %v837, %v833
    %v1182 = vpack.c.b16 %v838, %v834
    %v1183 = vpack.c.b16 %v839, %v835
    %v1184 = vpack.c.b16 %v840, %v836
    %v1185 = vpack.c.b16 %v845, %v841
    %v1186 = vpack.c.b16 %v846, %v842
    %v1187 = vpack.c.b16 %v847, %v843
    %v1188 = vpack.c.b16 %v848, %v844
    %v1189 = vpack.c.b16 %v853, %v849
    %v1190 = vpack.c.b16 %v854, %v850
    %v1191 = vpack.c.b16 %v855, %v851
    %v1192 = vpack.c.b16 %v856, %v852
    %v1193 = vpack.c.b16 %v861, %v857
    %v1194 = vpack.c.b16 %v862, %v858
    %v1195 = vpack.c.b16 %v863, %v859
    %v1196 = vpack.c.b16 %v864, %v860
    %v1197 = vpack.c.b16 %v869, %v865
    %v1198 = vpack.c.b16 %v870, %v866
    %v1199 = vpack.c.b16 %v871, %v867
    %v1200 = vpack.c.b16 %v872, %v868
    %v1201 = vpack.c.b16 %v877, %v873
    %v1202 = vpack.c.b16 %v878, %v874
    %v1203 = vpack.c.b16 %v879, %v875
    %v1204 = vpack.c.b16 %v880, %v876
    %v1205 = vpack.c.b16 %v885, %v881
    %v1206 = vpack.c.b16 %v886, %v882
    %v1207 = vpack.c.b16 %v887, %v883
    %v1208 = vpack.c.b16 %v888, %v884
    %v1209 = vpack.c.b16 %v893, %v889
    %v1210 = vpack.c.b16 %v894, %v890
    %v1211 = vpack.c.b16 %v895, %v891
    %v1212 = vpack.c.b16 %v896, %v892
    %v1213 = vpack.c.b16 %v901, %v897
    %v1214 = vpack.c.b16 %v902, %v898
    %v1215 = vpack.c.b16 %v903, %v899
    %v1216 = vpack.c.b16 %v904, %v900
    %v1217 = vpack.c.b16 %v909, %v905
    %v1218 = vpack.c.b16 %v910, %v906
    %v1219 = vpack.c.b16 %v911, %v907
    %v1220 = vpack.c.b16 %v912, %v908
    %v1221 = vpack.c.b16 %v917, %v913
    %v1222 = vpack.c.b16 %v918, %v914
    %v1223 = vpack.c.b16 %v919, %v915
    %v1224 = vpack.c.b16 %v920, %v916
    %v1225 = vpack.c.b16 %v925, %v921
    %v1226 = vpack.c.b16 %v926, %v922
    %v1227 = vpack.c.b16 %v927, %v923
    %v1228 = vpack.c.b16 %v928, %v924
    %v1229 = vpack.c.b16 %v933, %v929
    %v1230 = vpack.c.b16 %v934, %v930
    %v1231 = vpack.c.b16 %v935, %v931
    %v1232 = vpack.c.b16 %v936, %v932
    %v1233 = vpack.c.b16 %v941, %v937
    %v1234 = vpack.c.b16 %v942, %v938
    %v1235 = vpack.c.b16 %v943, %v939
    %v1236 = vpack.c.b16 %v944, %v940
    %v1237 = vpack.c.b16 %v949, %v945
    %v1238 = vpack.c.b16 %v950, %v946
    %v1239 = vpack.c.b16 %v951, %v947
    %v1240 = vpack.c.b16 %v952, %v948
    %v1241 = vpack.c.b16 %v957, %v953
    %v1242 = vpack.c.b16 %v958, %v954
    %v1243 = vpack.c.b16 %v959, %v955
    %v1244 = vpack.c.b16 %v960, %v956
    %v1245 = vpack.c.b16 %v965, %v961
    %v1246 = vpack.c.b16 %v966, %v962
    %v1247 = vpack.c.b16 %v967, %v963
    %v1248 = vpack.c.b16 %v968, %v964
    %v1249 = vpack.c.b16 %v973, %v969
    %v1250 = vpack.c.b16 %v974, %v970
    %v1251 = vpack.c.b16 %v975, %v971
    %v1252 = vpack.c.b16 %v976, %v972
    %v1253 = vpack.c.b16 %v981, %v977
    %v1254 = vpack.c.b16 %v982, %v978
    %v1255 = vpack.c.b16 %v983, %v979
    %v1256 = vpack.c.b16 %v984, %v980
    %v1257 = vpack.c.b16 %v989, %v985
    %v1258 = vpack.c.b16 %v990, %v986
    %v1259 = vpack.c.b16 %v991, %v987
    %v1260 = vpack.c.b16 %v992, %v988
    %v1261 = vpack.c.b16 %v997, %v993
    %v1262 = vpack.c.b16 %v998, %v994
    %v1263 = vpack.c.b16 %v999, %v995
    %v1264 = vpack.c.b16 %v1000, %v996
    %v1265 = vpack.c.b16 %v1005, %v1001
    %v1266 = vpack.c.b16 %v1006, %v1002
    %v1267 = vpack.c.b16 %v1007, %v1003
    %v1268 = vpack.c.b16 %v1008, %v1004
    %v1269 = vpack.c.b16 %v1013, %v1009
    %v1270 = vpack.c.b16 %v1014, %v1010
    %v1271 = vpack.c.b16 %v1015, %v1011
    %v1272 = vpack.c.b16 %v1016, %v1012
    %v1273 = vpack.c.b16 %v1021, %v1017
    %v1274 = vpack.c.b16 %v1022, %v1018
    %v1275 = vpack.c.b16 %v1023, %v1019
    %v1276 = vpack.c.b16 %v1024, %v1020
    %v1277 = vpack.c.b16 %v1029, %v1025
    %v1278 = vpack.c.b16 %v1030, %v1026
    %v1279 = vpack.c.b16 %v1031, %v1027
    %v1280 = vpack.c.b16 %v1032, %v1028
    %v1281 = vpack.c.b16 %v1037, %v1033
    %v1282 = vpack.c.b16 %v1038, %v1034
    %v1283 = vpack.c.b16 %v1039, %v1035
    %v1284 = vpack.c.b16 %v1040, %v1036
    %v1285 = vpack.c.b16 %v1045, %v1041
    %v1286 = vpack.c.b16 %v1046, %v1042
    %v1287 = vpack.c.b16 %v1047, %v1043
    %v1288 = vpack.c.b16 %v1048, %v1044
    %v1289 = vpack.c.b16 %v1053, %v1049
    %v1290 = vpack.c.b16 %v1054, %v1050
    %v1291 = vpack.c.b16 %v1055, %v1051
    %v1292 = vpack.c.b16 %v1056, %v1052
    %v1293 = vpack.c.b16 %v1061, %v1057
    %v1294 = vpack.c.b16 %v1062, %v1058
    %v1295 = vpack.c.b16 %v1063, %v1059
    %v1296 = vpack.c.b16 %v1064, %v1060
    %v1297 = vpack.c.b16 %v1069, %v1065
    %v1298 = vpack.c.b16 %v1070, %v1066
    %v1299 = vpack.c.b16 %v1071, %v1067
    %v1300 = vpack.c.b16 %v1072, %v1068
    %v1301 = vpack.c.b16 %v1077, %v1073
    %v1302 = vpack.c.b16 %v1078, %v1074
    %v1303 = vpack.c.b16 %v1079, %v1075
    %v1304 = vpack.c.b16 %v1080, %v1076
    %1529 = vmatpush.bf16.msra.mxu0 %v1109
    %1530 = vmatpush.bf16.msra.mxu0 %v1105
    %1531 = vmatpush.bf16.msra.mxu0 %v1101
    %1532 = vmatpush.bf16.msra.mxu0 %v1097
    %1533 = vmatpush.bf16.msra.mxu0 %v1093
    %1534 = vmatpush.bf16.msra.mxu0 %v1089
    %1535 = vmatpush.bf16.msra.mxu0 %v1085
    %1536 = vmatpush.bf16.msra.mxu0 %v1081
    %1537 = vmatmul.bf16.gmra.mxu0 %v395
    %v1538 = vpop.f32.mrf.mxu0
    %v1539 = vadd.f32 %v376, %v1538
    %v1540 = vpop.f32.mrf.mxu0
    %1541 = vdwg.mxu0
    %1542 = vmatpush.bf16.msra.mxu0 %v1141
    %1543 = vmatpush.bf16.msra.mxu0 %v1137
    %1544 = vmatpush.bf16.msra.mxu0 %v1133
    %1545 = vmatpush.bf16.msra.mxu0 %v1129
    %1546 = vmatpush.bf16.msra.mxu0 %v1125
    %1547 = vmatpush.bf16.msra.mxu0 %v1121
    %1548 = vmatpush.bf16.msra.mxu0 %v1117
    %1549 = vmatpush.bf16.msra.mxu0 %v1113
    %1550 = vmatmul.bf16.gmra.mxu0 %v396
    %v1551 = vpop.f32.mrf.mxu0
    %v1552 = vadd.f32 %v1539, %v1551
    %v1553 = vpop.f32.mrf.mxu0
    %1554 = vdwg.mxu0
    %1555 = vmatpush.bf16.msra.mxu0 %v1173
    %1556 = vmatpush.bf16.msra.mxu0 %v1169
    %1557 = vmatpush.bf16.msra.mxu0 %v1165
    %1558 = vmatpush.bf16.msra.mxu0 %v1161
    %1559 = vmatpush.bf16.msra.mxu0 %v1157
    %1560 = vmatpush.bf16.msra.mxu0 %v1153
    %1561 = vmatpush.bf16.msra.mxu0 %v1149
    %1562 = vmatpush.bf16.msra.mxu0 %v1145
    %1563 = vmatmul.bf16.gmra.mxu0 %v397
    %v1564 = vpop.f32.mrf.mxu0
    %v1565 = vadd.f32 %v1552, %v1564
    %v1566 = vpop.f32.mrf.mxu0
    %1567 = vdwg.mxu0
    %1568 = vmatpush.bf16.msra.mxu0 %v1205
    %1569 = vmatpush.bf16.msra.mxu0 %v1201
    %1570 = vmatpush.bf16.msra.mxu0 %v1197
    %1571 = vmatpush.bf16.msra.mxu0 %v1193
    %1572 = vmatpush.bf16.msra.mxu0 %v1189
    %1573 = vmatpush.bf16.msra.mxu0 %v1185
    %1574 = vmatpush.bf16.msra.mxu0 %v1181
    %1575 = vmatpush.bf16.msra.mxu0 %v1177
    %1576 = vmatmul.bf16.gmra.mxu0 %v398
    %v1577 = vpop.f32.mrf.mxu0
    %v1578 = vadd.f32 %v1565, %v1577
    %v1579 = vpop.f32.mrf.mxu0
    %1580 = vdwg.mxu0
    %1581 = vmatpush.bf16.msra.mxu0 %v1237
    %1582 = vmatpush.bf16.msra.mxu0 %v1233
    %1583 = vmatpush.bf16.msra.mxu0 %v1229
    %1584 = vmatpush.bf16.msra.mxu0 %v1225
    %1585 = vmatpush.bf16.msra.mxu0 %v1221
    %1586 = vmatpush.bf16.msra.mxu0 %v1217
    %1587 = vmatpush.bf16.msra.mxu0 %v1213
    %1588 = vmatpush.bf16.msra.mxu0 %v1209
    %1589 = vmatmul.bf16.gmra.mxu0 %v399
    %v1590 = vpop.f32.mrf.mxu0
    %v1591 = vadd.f32 %v1578, %v1590
    %v1592 = vpop.f32.mrf.mxu0
    %1593 = vdwg.mxu0
    %1594 = vmatpush.bf16.msra.mxu0 %v1269
    %1595 = vmatpush.bf16.msra.mxu0 %v1265
    %1596 = vmatpush.bf16.msra.mxu0 %v1261
    %1597 = vmatpush.bf16.msra.mxu0 %v1257
    %1598 = vmatpush.bf16.msra.mxu0 %v1253
    %1599 = vmatpush.bf16.msra.mxu0 %v1249
    %1600 = vmatpush.bf16.msra.mxu0 %v1245
    %1601 = vmatpush.bf16.msra.mxu0 %v1241
    %1602 = vmatmul.bf16.gmra.mxu0 %v400
    %v1603 = vpop.f32.mrf.mxu0
    %v1604 = vadd.f32 %v1591, %v1603
    %v1605 = vpop.f32.mrf.mxu0
    %1606 = vdwg.mxu0
    %1607 = vmatpush.bf16.msra.mxu0 %v1301
    %1608 = vmatpush.bf16.msra.mxu0 %v1297
    %1609 = vmatpush.bf16.msra.mxu0 %v1293
    %1610 = vmatpush.bf16.msra.mxu0 %v1289
    %1611 = vmatpush.bf16.msra.mxu0 %v1285
    %1612 = vmatpush.bf16.msra.mxu0 %v1281
    %1613 = vmatpush.bf16.msra.mxu0 %v1277
    %1614 = vmatpush.bf16.msra.mxu0 %v1273
    %1615 = vmatmul.bf16.gmra.mxu0 %v401
    %v1616 = vpop.f32.mrf.mxu0
    %v1617 = vadd.f32 %v1604, %v1616
    %v1618 = vpop.f32.mrf.mxu0
    %1619 = vdwg.mxu0
    %1620 = vmatpush.bf16.msra.mxu0 %v1110
    %1621 = vmatpush.bf16.msra.mxu0 %v1106
    %1622 = vmatpush.bf16.msra.mxu0 %v1102
    %1623 = vmatpush.bf16.msra.mxu0 %v1098
    %1624 = vmatpush.bf16.msra.mxu0 %v1094
    %1625 = vmatpush.bf16.msra.mxu0 %v1090
    %1626 = vmatpush.bf16.msra.mxu0 %v1086
    %1627 = vmatpush.bf16.msra.mxu0 %v1082
    %1628 = vmatmul.bf16.gmra.mxu0 %v395
    %v1629 = vpop.f32.mrf.mxu0
    %v1630 = vadd.f32 %v377, %v1629
    %v1631 = vpop.f32.mrf.mxu0
    %1632 = vdwg.mxu0
    %1633 = vmatpush.bf16.msra.mxu0 %v1142
    %1634 = vmatpush.bf16.msra.mxu0 %v1138
    %1635 = vmatpush.bf16.msra.mxu0 %v1134
    %1636 = vmatpush.bf16.msra.mxu0 %v1130
    %1637 = vmatpush.bf16.msra.mxu0 %v1126
    %1638 = vmatpush.bf16.msra.mxu0 %v1122
    %1639 = vmatpush.bf16.msra.mxu0 %v1118
    %1640 = vmatpush.bf16.msra.mxu0 %v1114
    %1641 = vmatmul.bf16.gmra.mxu0 %v396
    %v1642 = vpop.f32.mrf.mxu0
    %v1643 = vadd.f32 %v1630, %v1642
    %v1644 = vpop.f32.mrf.mxu0
    %1645 = vdwg.mxu0
    %1646 = vmatpush.bf16.msra.mxu0 %v1174
    %1647 = vmatpush.bf16.msra.mxu0 %v1170
    %1648 = vmatpush.bf16.msra.mxu0 %v1166
    %1649 = vmatpush.bf16.msra.mxu0 %v1162
    %1650 = vmatpush.bf16.msra.mxu0 %v1158
    %1651 = vmatpush.bf16.msra.mxu0 %v1154
    %1652 = vmatpush.bf16.msra.mxu0 %v1150
    %1653 = vmatpush.bf16.msra.mxu0 %v1146
    %1654 = vmatmul.bf16.gmra.mxu0 %v397
    %v1655 = vpop.f32.mrf.mxu0
    %v1656 = vadd.f32 %v1643, %v1655
    %v1657 = vpop.f32.mrf.mxu0
    %1658 = vdwg.mxu0
    %1659 = vmatpush.bf16.msra.mxu0 %v1206
    %1660 = vmatpush.bf16.msra.mxu0 %v1202
    %1661 = vmatpush.bf16.msra.mxu0 %v1198
    %1662 = vmatpush.bf16.msra.mxu0 %v1194
    %1663 = vmatpush.bf16.msra.mxu0 %v1190
    %1664 = vmatpush.bf16.msra.mxu0 %v1186
    %1665 = vmatpush.bf16.msra.mxu0 %v1182
    %1666 = vmatpush.bf16.msra.mxu0 %v1178
    %1667 = vmatmul.bf16.gmra.mxu0 %v398
    %v1668 = vpop.f32.mrf.mxu0
    %v1669 = vadd.f32 %v1656, %v1668
    %v1670 = vpop.f32.mrf.mxu0
    %1671 = vdwg.mxu0
    %1672 = vmatpush.bf16.msra.mxu0 %v1238
    %1673 = vmatpush.bf16.msra.mxu0 %v1234
    %1674 = vmatpush.bf16.msra.mxu0 %v1230
    %1675 = vmatpush.bf16.msra.mxu0 %v1226
    %1676 = vmatpush.bf16.msra.mxu0 %v1222
    %1677 = vmatpush.bf16.msra.mxu0 %v1218
    %1678 = vmatpush.bf16.msra.mxu0 %v1214
    %1679 = vmatpush.bf16.msra.mxu0 %v1210
    %1680 = vmatmul.bf16.gmra.mxu0 %v399
    %v1681 = vpop.f32.mrf.mxu0
    %v1682 = vadd.f32 %v1669, %v1681
    %v1683 = vpop.f32.mrf.mxu0
    %1684 = vdwg.mxu0
    %1685 = vmatpush.bf16.msra.mxu0 %v1270
    %1686 = vmatpush.bf16.msra.mxu0 %v1266
    %1687 = vmatpush.bf16.msra.mxu0 %v1262
    %1688 = vmatpush.bf16.msra.mxu0 %v1258
    %1689 = vmatpush.bf16.msra.mxu0 %v1254
    %1690 = vmatpush.bf16.msra.mxu0 %v1250
    %1691 = vmatpush.bf16.msra.mxu0 %v1246
    %1692 = vmatpush.bf16.msra.mxu0 %v1242
    %1693 = vmatmul.bf16.gmra.mxu0 %v400
    %v1694 = vpop.f32.mrf.mxu0
    %v1695 = vadd.f32 %v1682, %v1694
    %v1696 = vpop.f32.mrf.mxu0
    %1697 = vdwg.mxu0
    %1698 = vmatpush.bf16.msra.mxu0 %v1302
    %1699 = vmatpush.bf16.msra.mxu0 %v1298
    %1700 = vmatpush.bf16.msra.mxu0 %v1294
    %1701 = vmatpush.bf16.msra.mxu0 %v1290
    %1702 = vmatpush.bf16.msra.mxu0 %v1286
    %1703 = vmatpush.bf16.msra.mxu0 %v1282
    %1704 = vmatpush.bf16.msra.mxu0 %v1278
    %1705 = vmatpush.bf16.msra.mxu0 %v1274
    %1706 = vmatmul.bf16.gmra.mxu0 %v401
    %v1707 = vpop.f32.mrf.mxu0
    %v1708 = vadd.f32 %v1695, %v1707
    %v1709 = vpop.f32.mrf.mxu0
    %1710 = vdwg.mxu0
    %1711 = vmatpush.bf16.msra.mxu0 %v1111
    %1712 = vmatpush.bf16.msra.mxu0 %v1107
    %1713 = vmatpush.bf16.msra.mxu0 %v1103
    %1714 = vmatpush.bf16.msra.mxu0 %v1099
    %1715 = vmatpush.bf16.msra.mxu0 %v1095
    %1716 = vmatpush.bf16.msra.mxu0 %v1091
    %1717 = vmatpush.bf16.msra.mxu0 %v1087
    %1718 = vmatpush.bf16.msra.mxu0 %v1083
    %1719 = vmatmul.bf16.gmra.mxu0 %v395
    %v1720 = vpop.f32.mrf.mxu0
    %v1721 = vadd.f32 %v378, %v1720
    %v1722 = vpop.f32.mrf.mxu0
    %1723 = vdwg.mxu0
    %1724 = vmatpush.bf16.msra.mxu0 %v1143
    %1725 = vmatpush.bf16.msra.mxu0 %v1139
    %1726 = vmatpush.bf16.msra.mxu0 %v1135
    %1727 = vmatpush.bf16.msra.mxu0 %v1131
    %1728 = vmatpush.bf16.msra.mxu0 %v1127
    %1729 = vmatpush.bf16.msra.mxu0 %v1123
    %1730 = vmatpush.bf16.msra.mxu0 %v1119
    %1731 = vmatpush.bf16.msra.mxu0 %v1115
    %1732 = vmatmul.bf16.gmra.mxu0 %v396
    %v1733 = vpop.f32.mrf.mxu0
    %v1734 = vadd.f32 %v1721, %v1733
    %v1735 = vpop.f32.mrf.mxu0
    %1736 = vdwg.mxu0
    %1737 = vmatpush.bf16.msra.mxu0 %v1175
    %1738 = vmatpush.bf16.msra.mxu0 %v1171
    %1739 = vmatpush.bf16.msra.mxu0 %v1167
    %1740 = vmatpush.bf16.msra.mxu0 %v1163
    %1741 = vmatpush.bf16.msra.mxu0 %v1159
    %1742 = vmatpush.bf16.msra.mxu0 %v1155
    %1743 = vmatpush.bf16.msra.mxu0 %v1151
    %1744 = vmatpush.bf16.msra.mxu0 %v1147
    %1745 = vmatmul.bf16.gmra.mxu0 %v397
    %v1746 = vpop.f32.mrf.mxu0
    %v1747 = vadd.f32 %v1734, %v1746
    %v1748 = vpop.f32.mrf.mxu0
    %1749 = vdwg.mxu0
    %1750 = vmatpush.bf16.msra.mxu0 %v1207
    %1751 = vmatpush.bf16.msra.mxu0 %v1203
    %1752 = vmatpush.bf16.msra.mxu0 %v1199
    %1753 = vmatpush.bf16.msra.mxu0 %v1195
    %1754 = vmatpush.bf16.msra.mxu0 %v1191
    %1755 = vmatpush.bf16.msra.mxu0 %v1187
    %1756 = vmatpush.bf16.msra.mxu0 %v1183
    %1757 = vmatpush.bf16.msra.mxu0 %v1179
    %1758 = vmatmul.bf16.gmra.mxu0 %v398
    %v1759 = vpop.f32.mrf.mxu0
    %v1760 = vadd.f32 %v1747, %v1759
    %v1761 = vpop.f32.mrf.mxu0
    %1762 = vdwg.mxu0
    %1763 = vmatpush.bf16.msra.mxu0 %v1239
    %1764 = vmatpush.bf16.msra.mxu0 %v1235
    %1765 = vmatpush.bf16.msra.mxu0 %v1231
    %1766 = vmatpush.bf16.msra.mxu0 %v1227
    %1767 = vmatpush.bf16.msra.mxu0 %v1223
    %1768 = vmatpush.bf16.msra.mxu0 %v1219
    %1769 = vmatpush.bf16.msra.mxu0 %v1215
    %1770 = vmatpush.bf16.msra.mxu0 %v1211
    %1771 = vmatmul.bf16.gmra.mxu0 %v399
    %v1772 = vpop.f32.mrf.mxu0
    %v1773 = vadd.f32 %v1760, %v1772
    %v1774 = vpop.f32.mrf.mxu0
    %1775 = vdwg.mxu0
    %1776 = vmatpush.bf16.msra.mxu0 %v1271
    %1777 = vmatpush.bf16.msra.mxu0 %v1267
    %1778 = vmatpush.bf16.msra.mxu0 %v1263
    %1779 = vmatpush.bf16.msra.mxu0 %v1259
    %1780 = vmatpush.bf16.msra.mxu0 %v1255
    %1781 = vmatpush.bf16.msra.mxu0 %v1251
    %1782 = vmatpush.bf16.msra.mxu0 %v1247
    %1783 = vmatpush.bf16.msra.mxu0 %v1243
    %1784 = vmatmul.bf16.gmra.mxu0 %v400
    %v1785 = vpop.f32.mrf.mxu0
    %v1786 = vadd.f32 %v1773, %v1785
    %v1787 = vpop.f32.mrf.mxu0
    %1788 = vdwg.mxu0
    %1789 = vmatpush.bf16.msra.mxu0 %v1303
    %1790 = vmatpush.bf16.msra.mxu0 %v1299
    %1791 = vmatpush.bf16.msra.mxu0 %v1295
    %1792 = vmatpush.bf16.msra.mxu0 %v1291
    %1793 = vmatpush.bf16.msra.mxu0 %v1287
    %1794 = vmatpush.bf16.msra.mxu0 %v1283
    %1795 = vmatpush.bf16.msra.mxu0 %v1279
    %1796 = vmatpush.bf16.msra.mxu0 %v1275
    %1797 = vmatmul.bf16.gmra.mxu0 %v401
    %v1798 = vpop.f32.mrf.mxu0
    %v1799 = vadd.f32 %v1786, %v1798
    %v1800 = vpop.f32.mrf.mxu0
    %1801 = vdwg.mxu0
    %1802 = vmatpush.bf16.msra.mxu0 %v1112
    %1803 = vmatpush.bf16.msra.mxu0 %v1108
    %1804 = vmatpush.bf16.msra.mxu0 %v1104
    %1805 = vmatpush.bf16.msra.mxu0 %v1100
    %1806 = vmatpush.bf16.msra.mxu0 %v1096
    %1807 = vmatpush.bf16.msra.mxu0 %v1092
    %1808 = vmatpush.bf16.msra.mxu0 %v1088
    %1809 = vmatpush.bf16.msra.mxu0 %v1084
    %1810 = vmatmul.bf16.gmra.mxu0 %v395
    %v1811 = vpop.f32.mrf.mxu0
    %v1812 = vadd.f32 %v379, %v1811
    %v1813 = vpop.f32.mrf.mxu0
    %1814 = vdwg.mxu0
    %1815 = vmatpush.bf16.msra.mxu0 %v1144
    %1816 = vmatpush.bf16.msra.mxu0 %v1140
    %1817 = vmatpush.bf16.msra.mxu0 %v1136
    %1818 = vmatpush.bf16.msra.mxu0 %v1132
    %1819 = vmatpush.bf16.msra.mxu0 %v1128
    %1820 = vmatpush.bf16.msra.mxu0 %v1124
    %1821 = vmatpush.bf16.msra.mxu0 %v1120
    %1822 = vmatpush.bf16.msra.mxu0 %v1116
    %1823 = vmatmul.bf16.gmra.mxu0 %v396
    %v1824 = vpop.f32.mrf.mxu0
    %v1825 = vadd.f32 %v1812, %v1824
    %v1826 = vpop.f32.mrf.mxu0
    %1827 = vdwg.mxu0
    %1828 = vmatpush.bf16.msra.mxu0 %v1176
    %1829 = vmatpush.bf16.msra.mxu0 %v1172
    %1830 = vmatpush.bf16.msra.mxu0 %v1168
    %1831 = vmatpush.bf16.msra.mxu0 %v1164
    %1832 = vmatpush.bf16.msra.mxu0 %v1160
    %1833 = vmatpush.bf16.msra.mxu0 %v1156
    %1834 = vmatpush.bf16.msra.mxu0 %v1152
    %1835 = vmatpush.bf16.msra.mxu0 %v1148
    %1836 = vmatmul.bf16.gmra.mxu0 %v397
    %v1837 = vpop.f32.mrf.mxu0
    %v1838 = vadd.f32 %v1825, %v1837
    %v1839 = vpop.f32.mrf.mxu0
    %1840 = vdwg.mxu0
    %1841 = vmatpush.bf16.msra.mxu0 %v1208
    %1842 = vmatpush.bf16.msra.mxu0 %v1204
    %1843 = vmatpush.bf16.msra.mxu0 %v1200
    %1844 = vmatpush.bf16.msra.mxu0 %v1196
    %1845 = vmatpush.bf16.msra.mxu0 %v1192
    %1846 = vmatpush.bf16.msra.mxu0 %v1188
    %1847 = vmatpush.bf16.msra.mxu0 %v1184
    %1848 = vmatpush.bf16.msra.mxu0 %v1180
    %1849 = vmatmul.bf16.gmra.mxu0 %v398
    %v1850 = vpop.f32.mrf.mxu0
    %v1851 = vadd.f32 %v1838, %v1850
    %v1852 = vpop.f32.mrf.mxu0
    %1853 = vdwg.mxu0
    %1854 = vmatpush.bf16.msra.mxu0 %v1240
    %1855 = vmatpush.bf16.msra.mxu0 %v1236
    %1856 = vmatpush.bf16.msra.mxu0 %v1232
    %1857 = vmatpush.bf16.msra.mxu0 %v1228
    %1858 = vmatpush.bf16.msra.mxu0 %v1224
    %1859 = vmatpush.bf16.msra.mxu0 %v1220
    %1860 = vmatpush.bf16.msra.mxu0 %v1216
    %1861 = vmatpush.bf16.msra.mxu0 %v1212
    %1862 = vmatmul.bf16.gmra.mxu0 %v399
    %v1863 = vpop.f32.mrf.mxu0
    %v1864 = vadd.f32 %v1851, %v1863
    %v1865 = vpop.f32.mrf.mxu0
    %1866 = vdwg.mxu0
    %1867 = vmatpush.bf16.msra.mxu0 %v1272
    %1868 = vmatpush.bf16.msra.mxu0 %v1268
    %1869 = vmatpush.bf16.msra.mxu0 %v1264
    %1870 = vmatpush.bf16.msra.mxu0 %v1260
    %1871 = vmatpush.bf16.msra.mxu0 %v1256
    %1872 = vmatpush.bf16.msra.mxu0 %v1252
    %1873 = vmatpush.bf16.msra.mxu0 %v1248
    %1874 = vmatpush.bf16.msra.mxu0 %v1244
    %1875 = vmatmul.bf16.gmra.mxu0 %v400
    %v1876 = vpop.f32.mrf.mxu0
    %v1877 = vadd.f32 %v1864, %v1876
    %v1878 = vpop.f32.mrf.mxu0
    %1879 = vdwg.mxu0
    %1880 = vmatpush.bf16.msra.mxu0 %v1304
    %1881 = vmatpush.bf16.msra.mxu0 %v1300
    %1882 = vmatpush.bf16.msra.mxu0 %v1296
    %1883 = vmatpush.bf16.msra.mxu0 %v1292
    %1884 = vmatpush.bf16.msra.mxu0 %v1288
    %1885 = vmatpush.bf16.msra.mxu0 %v1284
    %1886 = vmatpush.bf16.msra.mxu0 %v1280
    %1887 = vmatpush.bf16.msra.mxu0 %v1276
    %1888 = vmatmul.bf16.gmra.mxu0 %v401
    %v1889 = vpop.f32.mrf.mxu0
    %v1890 = vadd.f32 %v1877, %v1889
    %v1891 = vpop.f32.mrf.mxu0
    %1892 = vdwg.mxu0
    %vm1893 = vcmp.ge.f32.partialorder %v1617, 0.0
    %vm1894 = vcmp.ge.f32.partialorder %v1708, 0.0
    %vm1895 = vcmp.ge.f32.partialorder %v1799, 0.0
    %vm1896 = vcmp.ge.f32.partialorder %v1890, 0.0
    %v1897 = vmul.f32 %v1617, 0.2
    %v1898 = vmul.f32 %v1708, 0.2
    %v1899 = vmul.f32 %v1799, 0.2
    %v1900 = vmul.f32 %v1890, 0.2
    %v1901 = vsel %vm1893, %v1617, %v1897
    %v1902 = vsel %vm1894, %v1708, %v1898
    %v1903 = vsel %vm1895, %v1799, %v1899
    %v1904 = vsel %vm1896, %v1890, %v1900
    %v1905 = vpack.c.bf16 %v1901, %v1901
    %v1906 = vpack.c.bf16 %v1902, %v1902
    %v1907 = vpack.c.bf16 %v1903, %v1903
    %v1908 = vpack.c.bf16 %v1904, %v1904
    %v1909 = vld [vmem:[#allocation9] sm:$0xff]
    %v1910 = vld [vmem:[#allocation9 + $0x8] sm:$0xff]
    %v1911 = vld [vmem:[#allocation9 + $0x10] sm:$0xff]
    %v1912 = vld [vmem:[#allocation9 + $0x18] sm:$0xff]
    %v1913 = vld [vmem:[#allocation9 + $0x20] sm:$0xff]
    %v1914 = vld [vmem:[#allocation9 + $0x28] sm:$0xff]
    %v1915 = vld [vmem:[#allocation9 + $0x30] sm:$0xff]
    %v1916 = vld [vmem:[#allocation9 + $0x38] sm:$0xff]
    %v1917 = vld [vmem:[#allocation9 + $0x40] sm:$0xff]
    %v1918 = vld [vmem:[#allocation9 + $0x48] sm:$0xff]
    %v1919 = vld [vmem:[#allocation9 + $0x50] sm:$0xff]
    %v1920 = vld [vmem:[#allocation9 + $0x58] sm:$0xff]
    %v1921 = vld [vmem:[#allocation9 + $0x60] sm:$0xff]
    %v1922 = vld [vmem:[#allocation9 + $0x68] sm:$0xff]
    %v1923 = vld [vmem:[#allocation9 + $0x70] sm:$0xff]
    %v1924 = vld [vmem:[#allocation9 + $0x78] sm:$0xff]
    %v1925 = vld [vmem:[#allocation9 + $0x80] sm:$0xff]
    %v1926 = vld [vmem:[#allocation9 + $0x88] sm:$0xff]
    %v1927 = vld [vmem:[#allocation9 + $0x90] sm:$0xff]
    %v1928 = vld [vmem:[#allocation9 + $0x98] sm:$0xff]
    %v1929 = vld [vmem:[#allocation9 + $0xa0] sm:$0xff]
    %v1930 = vld [vmem:[#allocation9 + $0xa8] sm:$0xff]
    %v1931 = vld [vmem:[#allocation9 + $0xb0] sm:$0xff]
    %v1932 = vld [vmem:[#allocation9 + $0xb8] sm:$0xff]
    %v1933 = vld [vmem:[#allocation9 + $0xc0] sm:$0xff]
    %v1934 = vld [vmem:[#allocation9 + $0xc8] sm:$0xff]
    %v1935 = vld [vmem:[#allocation9 + $0xd0] sm:$0xff]
    %v1936 = vld [vmem:[#allocation9 + $0xd8] sm:$0xff]
    %v1937 = vld [vmem:[#allocation9 + $0xe0] sm:$0xff]
    %v1938 = vld [vmem:[#allocation9 + $0xe8] sm:$0xff]
    %v1939 = vld [vmem:[#allocation9 + $0xf0] sm:$0xff]
    %v1940 = vld [vmem:[#allocation9 + $0xf8] sm:$0xff]
    %v1941 = vld [vmem:[#allocation9 + $0x100] sm:$0xff]
    %v1942 = vld [vmem:[#allocation9 + $0x108] sm:$0xff]
    %v1943 = vld [vmem:[#allocation9 + $0x110] sm:$0xff]
    %v1944 = vld [vmem:[#allocation9 + $0x118] sm:$0xff]
    %v1945 = vld [vmem:[#allocation9 + $0x120] sm:$0xff]
    %v1946 = vld [vmem:[#allocation9 + $0x128] sm:$0xff]
    %v1947 = vld [vmem:[#allocation9 + $0x130] sm:$0xff]
    %v1948 = vld [vmem:[#allocation9 + $0x138] sm:$0xff]
    %v1949 = vld [vmem:[#allocation9 + $0x140] sm:$0xff]
    %v1950 = vld [vmem:[#allocation9 + $0x148] sm:$0xff]
    %v1951 = vld [vmem:[#allocation9 + $0x150] sm:$0xff]
    %v1952 = vld [vmem:[#allocation9 + $0x158] sm:$0xff]
    %v1953 = vld [vmem:[#allocation9 + $0x160] sm:$0xff]
    %v1954 = vld [vmem:[#allocation9 + $0x168] sm:$0xff]
    %v1955 = vld [vmem:[#allocation9 + $0x170] sm:$0xff]
    %v1956 = vld [vmem:[#allocation9 + $0x178] sm:$0xff]
    %v1957 = vld [vmem:[#allocation9 + $0x180] sm:$0xff]
    %v1958 = vld [vmem:[#allocation9 + $0x188] sm:$0xff]
    %v1959 = vld [vmem:[#allocation9 + $0x190] sm:$0xff]
    %v1960 = vld [vmem:[#allocation9 + $0x198] sm:$0xff]
    %v1961 = vld [vmem:[#allocation9 + $0x1a0] sm:$0xff]
    %v1962 = vld [vmem:[#allocation9 + $0x1a8] sm:$0xff]
    %v1963 = vld [vmem:[#allocation9 + $0x1b0] sm:$0xff]
    %v1964 = vld [vmem:[#allocation9 + $0x1b8] sm:$0xff]
    %v1965 = vld [vmem:[#allocation9 + $0x1c0] sm:$0xff]
    %v1966 = vld [vmem:[#allocation9 + $0x1c8] sm:$0xff]
    %v1967 = vld [vmem:[#allocation9 + $0x1d0] sm:$0xff]
    %v1968 = vld [vmem:[#allocation9 + $0x1d8] sm:$0xff]
    %v1969 = vld [vmem:[#allocation9 + $0x1e0] sm:$0xff]
    %v1970 = vld [vmem:[#allocation9 + $0x1e8] sm:$0xff]
    %v1971 = vld [vmem:[#allocation9 + $0x1f0] sm:$0xff]
    %v1972 = vld [vmem:[#allocation9 + $0x1f8] sm:$0xff]
    %v1973 = vld [vmem:[%s4] sm:$0x3]
    %v1975 = vperm.slane %v1973, 0
    %v1976 = vperm.slane %v1973, 1
    %v2043 = vunpack.c.l.b16 %v1909
    %v2044 = vunpack.c.h.b16 %v1909
    %v2045 = vunpack.c.l.b16 %v1910
    %v2046 = vunpack.c.h.b16 %v1910
    %v2047 = vunpack.c.l.b16 %v1911
    %v2048 = vunpack.c.h.b16 %v1911
    %v2049 = vunpack.c.l.b16 %v1912
    %v2050 = vunpack.c.h.b16 %v1912
    %v2051 = vunpack.c.l.b16 %v1913
    %v2052 = vunpack.c.h.b16 %v1913
    %v2053 = vunpack.c.l.b16 %v1914
    %v2054 = vunpack.c.h.b16 %v1914
    %v2055 = vunpack.c.l.b16 %v1915
    %v2056 = vunpack.c.h.b16 %v1915
    %v2057 = vunpack.c.l.b16 %v1916
    %v2058 = vunpack.c.h.b16 %v1916
    %v2059 = vunpack.c.l.b16 %v1917
    %v2060 = vunpack.c.h.b16 %v1917
    %v2061 = vunpack.c.l.b16 %v1918
    %v2062 = vunpack.c.h.b16 %v1918
    %v2063 = vunpack.c.l.b16 %v1919
    %v2064 = vunpack.c.h.b16 %v1919
    %v2065 = vunpack.c.l.b16 %v1920
    %v2066 = vunpack.c.h.b16 %v1920
    %v2067 = vunpack.c.l.b16 %v1921
    %v2068 = vunpack.c.h.b16 %v1921
    %v2069 = vunpack.c.l.b16 %v1922
    %v2070 = vunpack.c.h.b16 %v1922
    %v2071 = vunpack.c.l.b16 %v1923
    %v2072 = vunpack.c.h.b16 %v1923
    %v2073 = vunpack.c.l.b16 %v1924
    %v2074 = vunpack.c.h.b16 %v1924
    %v2075 = vunpack.c.l.b16 %v1925
    %v2076 = vunpack.c.h.b16 %v1925
    %v2077 = vunpack.c.l.b16 %v1926
    %v2078 = vunpack.c.h.b16 %v1926
    %v2079 = vunpack.c.l.b16 %v1927
    %v2080 = vunpack.c.h.b16 %v1927
    %v2081 = vunpack.c.l.b16 %v1928
    %v2082 = vunpack.c.h.b16 %v1928
    %v2083 = vunpack.c.l.b16 %v1929
    %v2084 = vunpack.c.h.b16 %v1929
    %v2085 = vunpack.c.l.b16 %v1930
    %v2086 = vunpack.c.h.b16 %v1930
    %v2087 = vunpack.c.l.b16 %v1931
    %v2088 = vunpack.c.h.b16 %v1931
    %v2089 = vunpack.c.l.b16 %v1932
    %v2090 = vunpack.c.h.b16 %v1932
    %v2091 = vunpack.c.l.b16 %v1933
    %v2092 = vunpack.c.h.b16 %v1933
    %v2093 = vunpack.c.l.b16 %v1934
    %v2094 = vunpack.c.h.b16 %v1934
    %v2095 = vunpack.c.l.b16 %v1935
    %v2096 = vunpack.c.h.b16 %v1935
    %v2097 = vunpack.c.l.b16 %v1936
    %v2098 = vunpack.c.h.b16 %v1936
    %v2099 = vunpack.c.l.b16 %v1937
    %v2100 = vunpack.c.h.b16 %v1937
    %v2101 = vunpack.c.l.b16 %v1938
    %v2102 = vunpack.c.h.b16 %v1938
    %v2103 = vunpack.c.l.b16 %v1939
    %v2104 = vunpack.c.h.b16 %v1939
    %v2105 = vunpack.c.l.b16 %v1940
    %v2106 = vunpack.c.h.b16 %v1940
    %v2107 = vunpack.c.l.b16 %v1941
    %v2108 = vunpack.c.h.b16 %v1941
    %v2109 = vunpack.c.l.b16 %v1942
    %v2110 = vunpack.c.h.b16 %v1942
    %v2111 = vunpack.c.l.b16 %v1943
    %v2112 = vunpack.c.h.b16 %v1943
    %v2113 = vunpack.c.l.b16 %v1944
    %v2114 = vunpack.c.h.b16 %v1944
    %v2115 = vunpack.c.l.b16 %v1945
    %v2116 = vunpack.c.h.b16 %v1945
    %v2117 = vunpack.c.l.b16 %v1946
    %v2118 = vunpack.c.h.b16 %v1946
    %v2119 = vunpack.c.l.b16 %v1947
    %v2120 = vunpack.c.h.b16 %v1947
    %v2121 = vunpack.c.l.b16 %v1948
    %v2122 = vunpack.c.h.b16 %v1948
    %v2123 = vunpack.c.l.b16 %v1949
    %v2124 = vunpack.c.h.b16 %v1949
    %v2125 = vunpack.c.l.b16 %v1950
    %v2126 = vunpack.c.h.b16 %v1950
    %v2127 = vunpack.c.l.b16 %v1951
    %v2128 = vunpack.c.h.b16 %v1951
    %v2129 = vunpack.c.l.b16 %v1952
    %v2130 = vunpack.c.h.b16 %v1952
    %v2131 = vunpack.c.l.b16 %v1953
    %v2132 = vunpack.c.h.b16 %v1953
    %v2133 = vunpack.c.l.b16 %v1954
    %v2134 = vunpack.c.h.b16 %v1954
    %v2135 = vunpack.c.l.b16 %v1955
    %v2136 = vunpack.c.h.b16 %v1955
    %v2137 = vunpack.c.l.b16 %v1956
    %v2138 = vunpack.c.h.b16 %v1956
    %v2139 = vunpack.c.l.b16 %v1957
    %v2140 = vunpack.c.h.b16 %v1957
    %v2141 = vunpack.c.l.b16 %v1958
    %v2142 = vunpack.c.h.b16 %v1958
    %v2143 = vunpack.c.l.b16 %v1959
    %v2144 = vunpack.c.h.b16 %v1959
    %v2145 = vunpack.c.l.b16 %v1960
    %v2146 = vunpack.c.h.b16 %v1960
    %v2147 = vunpack.c.l.b16 %v1961
    %v2148 = vunpack.c.h.b16 %v1961
    %v2149 = vunpack.c.l.b16 %v1962
    %v2150 = vunpack.c.h.b16 %v1962
    %v2151 = vunpack.c.l.b16 %v1963
    %v2152 = vunpack.c.h.b16 %v1963
    %v2153 = vunpack.c.l.b16 %v1964
    %v2154 = vunpack.c.h.b16 %v1964
    %v2155 = vunpack.c.l.b16 %v1965
    %v2156 = vunpack.c.h.b16 %v1965
    %v2157 = vunpack.c.l.b16 %v1966
    %v2158 = vunpack.c.h.b16 %v1966
    %v2159 = vunpack.c.l.b16 %v1967
    %v2160 = vunpack.c.h.b16 %v1967
    %v2161 = vunpack.c.l.b16 %v1968
    %v2162 = vunpack.c.h.b16 %v1968
    %v2163 = vunpack.c.l.b16 %v1969
    %v2164 = vunpack.c.h.b16 %v1969
    %v2165 = vunpack.c.l.b16 %v1970
    %v2166 = vunpack.c.h.b16 %v1970
    %v2167 = vunpack.c.l.b16 %v1971
    %v2168 = vunpack.c.h.b16 %v1971
    %v2169 = vunpack.c.l.b16 %v1972
    %v2170 = vunpack.c.h.b16 %v1972
    %v2171 = vpack.c.b16 %v2045, %v2043
    %v2172 = vpack.c.b16 %v2046, %v2044
    %v2173 = vpack.c.b16 %v2049, %v2047
    %v2174 = vpack.c.b16 %v2050, %v2048
    %v2175 = vpack.c.b16 %v2053, %v2051
    %v2176 = vpack.c.b16 %v2054, %v2052
    %v2177 = vpack.c.b16 %v2057, %v2055
    %v2178 = vpack.c.b16 %v2058, %v2056
    %v2179 = vpack.c.b16 %v2061, %v2059
    %v2180 = vpack.c.b16 %v2062, %v2060
    %v2181 = vpack.c.b16 %v2065, %v2063
    %v2182 = vpack.c.b16 %v2066, %v2064
    %v2183 = vpack.c.b16 %v2069, %v2067
    %v2184 = vpack.c.b16 %v2070, %v2068
    %v2185 = vpack.c.b16 %v2073, %v2071
    %v2186 = vpack.c.b16 %v2074, %v2072
    %v2187 = vpack.c.b16 %v2077, %v2075
    %v2188 = vpack.c.b16 %v2078, %v2076
    %v2189 = vpack.c.b16 %v2081, %v2079
    %v2190 = vpack.c.b16 %v2082, %v2080
    %v2191 = vpack.c.b16 %v2085, %v2083
    %v2192 = vpack.c.b16 %v2086, %v2084
    %v2193 = vpack.c.b16 %v2089, %v2087
    %v2194 = vpack.c.b16 %v2090, %v2088
    %v2195 = vpack.c.b16 %v2093, %v2091
    %v2196 = vpack.c.b16 %v2094, %v2092
    %v2197 = vpack.c.b16 %v2097, %v2095
    %v2198 = vpack.c.b16 %v2098, %v2096
    %v2199 = vpack.c.b16 %v2101, %v2099
    %v2200 = vpack.c.b16 %v2102, %v2100
    %v2201 = vpack.c.b16 %v2105, %v2103
    %v2202 = vpack.c.b16 %v2106, %v2104
    %v2203 = vpack.c.b16 %v2109, %v2107
    %v2204 = vpack.c.b16 %v2110, %v2108
    %v2205 = vpack.c.b16 %v2113, %v2111
    %v2206 = vpack.c.b16 %v2114, %v2112
    %v2207 = vpack.c.b16 %v2117, %v2115
    %v2208 = vpack.c.b16 %v2118, %v2116
    %v2209 = vpack.c.b16 %v2121, %v2119
    %v2210 = vpack.c.b16 %v2122, %v2120
    %v2211 = vpack.c.b16 %v2125, %v2123
    %v2212 = vpack.c.b16 %v2126, %v2124
    %v2213 = vpack.c.b16 %v2129, %v2127
    %v2214 = vpack.c.b16 %v2130, %v2128
    %v2215 = vpack.c.b16 %v2133, %v2131
    %v2216 = vpack.c.b16 %v2134, %v2132
    %v2217 = vpack.c.b16 %v2137, %v2135
    %v2218 = vpack.c.b16 %v2138, %v2136
    %v2219 = vpack.c.b16 %v2141, %v2139
    %v2220 = vpack.c.b16 %v2142, %v2140
    %v2221 = vpack.c.b16 %v2145, %v2143
    %v2222 = vpack.c.b16 %v2146, %v2144
    %v2223 = vpack.c.b16 %v2149, %v2147
    %v2224 = vpack.c.b16 %v2150, %v2148
    %v2225 = vpack.c.b16 %v2153, %v2151
    %v2226 = vpack.c.b16 %v2154, %v2152
    %v2227 = vpack.c.b16 %v2157, %v2155
    %v2228 = vpack.c.b16 %v2158, %v2156
    %v2229 = vpack.c.b16 %v2161, %v2159
    %v2230 = vpack.c.b16 %v2162, %v2160
    %v2231 = vpack.c.b16 %v2165, %v2163
    %v2232 = vpack.c.b16 %v2166, %v2164
    %v2233 = vpack.c.b16 %v2169, %v2167
    %v2234 = vpack.c.b16 %v2170, %v2168
    %2299 = vmatpush.bf16.msra.mxu0 %v2185
    %2300 = vmatpush.bf16.msra.mxu0 %v2183
    %2301 = vmatpush.bf16.msra.mxu0 %v2181
    %2302 = vmatpush.bf16.msra.mxu0 %v2179
    %2303 = vmatpush.bf16.msra.mxu0 %v2177
    %2304 = vmatpush.bf16.msra.mxu0 %v2175
    %2305 = vmatpush.bf16.msra.mxu0 %v2173
    %2306 = vmatpush.bf16.msra.mxu0 %v2171
    %2307 = vmatmul.bf16.gmra.mxu0 %v1905
    %v2308 = vpop.f32.mrf.mxu0
    %v2309 = vadd.f32 %v1975, %v2308
    %v2310 = vpop.f32.mrf.mxu0
    %2311 = vdwg.mxu0
    %2312 = vmatpush.bf16.msra.mxu0 %v2201
    %2313 = vmatpush.bf16.msra.mxu0 %v2199
    %2314 = vmatpush.bf16.msra.mxu0 %v2197
    %2315 = vmatpush.bf16.msra.mxu0 %v2195
    %2316 = vmatpush.bf16.msra.mxu0 %v2193
    %2317 = vmatpush.bf16.msra.mxu0 %v2191
    %2318 = vmatpush.bf16.msra.mxu0 %v2189
    %2319 = vmatpush.bf16.msra.mxu0 %v2187
    %2320 = vmatmul.bf16.gmra.mxu0 %v1906
    %v2321 = vpop.f32.mrf.mxu0
    %v2322 = vadd.f32 %v2309, %v2321
    %v2323 = vpop.f32.mrf.mxu0
    %2324 = vdwg.mxu0
    %2325 = vmatpush.bf16.msra.mxu0 %v2217
    %2326 = vmatpush.bf16.msra.mxu0 %v2215
    %2327 = vmatpush.bf16.msra.mxu0 %v2213
    %2328 = vmatpush.bf16.msra.mxu0 %v2211
    %2329 = vmatpush.bf16.msra.mxu0 %v2209
    %2330 = vmatpush.bf16.msra.mxu0 %v2207
    %2331 = vmatpush.bf16.msra.mxu0 %v2205
    %2332 = vmatpush.bf16.msra.mxu0 %v2203
    %2333 = vmatmul.bf16.gmra.mxu0 %v1907
    %v2334 = vpop.f32.mrf.mxu0
    %v2335 = vadd.f32 %v2322, %v2334
    %v2336 = vpop.f32.mrf.mxu0
    %2337 = vdwg.mxu0
    %2338 = vmatpush.bf16.msra.mxu0 %v2233
    %2339 = vmatpush.bf16.msra.mxu0 %v2231
    %2340 = vmatpush.bf16.msra.mxu0 %v2229
    %2341 = vmatpush.bf16.msra.mxu0 %v2227
    %2342 = vmatpush.bf16.msra.mxu0 %v2225
    %2343 = vmatpush.bf16.msra.mxu0 %v2223
    %2344 = vmatpush.bf16.msra.mxu0 %v2221
    %2345 = vmatpush.bf16.msra.mxu0 %v2219
    %2346 = vmatmul.bf16.gmra.mxu0 %v1908
    %v2347 = vpop.f32.mrf.mxu0
    %v2348 = vadd.f32 %v2335, %v2347
    %v2349 = vpop.f32.mrf.mxu0
    %2350 = vdwg.mxu0
    %2351 = vmatpush.bf16.msra.mxu0 %v2186
    %2352 = vmatpush.bf16.msra.mxu0 %v2184
    %2353 = vmatpush.bf16.msra.mxu0 %v2182
    %2354 = vmatpush.bf16.msra.mxu0 %v2180
    %2355 = vmatpush.bf16.msra.mxu0 %v2178
    %2356 = vmatpush.bf16.msra.mxu0 %v2176
    %2357 = vmatpush.bf16.msra.mxu0 %v2174
    %2358 = vmatpush.bf16.msra.mxu0 %v2172
    %2359 = vmatmul.bf16.gmra.mxu0 %v1905
    %v2360 = vpop.f32.mrf.mxu0
    %v2361 = vadd.f32 %v1976, %v2360
    %v2362 = vpop.f32.mrf.mxu0
    %2363 = vdwg.mxu0
    %2364 = vmatpush.bf16.msra.mxu0 %v2202
    %2365 = vmatpush.bf16.msra.mxu0 %v2200
    %2366 = vmatpush.bf16.msra.mxu0 %v2198
    %2367 = vmatpush.bf16.msra.mxu0 %v2196
    %2368 = vmatpush.bf16.msra.mxu0 %v2194
    %2369 = vmatpush.bf16.msra.mxu0 %v2192
    %2370 = vmatpush.bf16.msra.mxu0 %v2190
    %2371 = vmatpush.bf16.msra.mxu0 %v2188
    %2372 = vmatmul.bf16.gmra.mxu0 %v1906
    %v2373 = vpop.f32.mrf.mxu0
    %v2374 = vadd.f32 %v2361, %v2373
    %v2375 = vpop.f32.mrf.mxu0
    %2376 = vdwg.mxu0
    %2377 = vmatpush.bf16.msra.mxu0 %v2218
    %2378 = vmatpush.bf16.msra.mxu0 %v2216
    %2379 = vmatpush.bf16.msra.mxu0 %v2214
    %2380 = vmatpush.bf16.msra.mxu0 %v2212
    %2381 = vmatpush.bf16.msra.mxu0 %v2210
    %2382 = vmatpush.bf16.msra.mxu0 %v2208
    %2383 = vmatpush.bf16.msra.mxu0 %v2206
    %2384 = vmatpush.bf16.msra.mxu0 %v2204
    %2385 = vmatmul.bf16.gmra.mxu0 %v1907
    %v2386 = vpop.f32.mrf.mxu0
    %v2387 = vadd.f32 %v2374, %v2386
    %v2388 = vpop.f32.mrf.mxu0
    %2389 = vdwg.mxu0
    %2390 = vmatpush.bf16.msra.mxu0 %v2234
    %2391 = vmatpush.bf16.msra.mxu0 %v2232
    %2392 = vmatpush.bf16.msra.mxu0 %v2230
    %2393 = vmatpush.bf16.msra.mxu0 %v2228
    %2394 = vmatpush.bf16.msra.mxu0 %v2226
    %2395 = vmatpush.bf16.msra.mxu0 %v2224
    %2396 = vmatpush.bf16.msra.mxu0 %v2222
    %2397 = vmatpush.bf16.msra.mxu0 %v2220
    %2398 = vmatmul.bf16.gmra.mxu0 %v1908
    %v2399 = vpop.f32.mrf.mxu0
    %v2400 = vadd.f32 %v2387, %v2399
    %v2401 = vpop.f32.mrf.mxu0
    %2402 = vdwg.mxu0
    %vm2403 = vcmp.ge.f32.partialorder %v2348, 0.0
    %vm2404 = vcmp.ge.f32.partialorder %v2400, 0.0
    %v2405 = vmul.f32 %v2348, 0.2
    %v2406 = vmul.f32 %v2400, 0.2
    %v2407 = vsel %vm2403, %v2348, %v2405
    %v2408 = vsel %vm2404, %v2400, %v2406
    %v2409 = vld [vmem:[%s5] sm:$0x3]
    %v2411 = vperm.slane %v2409, 0
    %v2412 = vperm.slane %v2409, 1
    %v2415 = vmul.f32 %v2407, %v2411
    %v2416 = vmul.f32 %v2408, %v2412
    %v2417 = vadd.f32 %v2415, %v2416
    %2418 = vadd.xlane.f32.xlu0 %v2417
    %v2419 = vpop.xlane.xlu0 %2418
    %v2420 = vld [vmem:[#allocation3] sm:$0x1]
    %v2422 = vperm.slane %v2420, 0
    %v2424 = vadd.f32 %v2419, %v2422
    %vm2425 = vcmask 7168
    %2426 = vst.msk [vmem:[#allocation11] sm:$0xff] %vm2425, %v2424
    // Predicated region
    $region46: #{tpu_custom_call.1} parent=1 // pred_check
      _
    $region47: #{tpu_custom_call.1} parent=1 // pred_check_branch
      %2428 = sbr.rel (0) target = $region49
    $region48: #{tpu_custom_call.1} parent=1 // pred_region
      // Predicated region
      $region50: #{tpu_custom_call.1} parent=48 // pred_check
        _
      $region51: #{tpu_custom_call.1} parent=48 // pred_check_branch
        %2430 = sbr.rel (0) target = $region53
      $region52: #{tpu_custom_call.1} parent=48 // pred_region
        // Predicated region
        $region54: #{tpu_custom_call.1} parent=52 // pred_check
          _
        $region55: #{tpu_custom_call.1} parent=52 // pred_check_branch
          %2432 = sbr.rel target = $region57
        $region56: #{tpu_custom_call.1} parent=52 // pred_region
          // Predicated region
          $region69: #{tpu_custom_call.1} parent=56 // pred_check
            _
          $region70: #{tpu_custom_call.1} parent=56 // pred_check_branch
            %2448 = sbr.rel (0) target = $region72
          $region71: #{tpu_custom_call.1} parent=56 // pred_region
            %s2450 = ssub.s32 4, 1
            loop: start=0, step=1, limit=1
            $region73: #{tpu_custom_call.1} parent=71 // loop_pre_header
              _
            $region74: #{tpu_custom_call.1} parent=71 // loop_header
              %s2452 = sphi 0, %s2456
              %p2453 = scmp.ge.s32.totalorder %s2452, 1
              %s2457 = sphi [#allocation11], [#allocation11]
              %s2458 = sphi %s7, %s7
            $region75: #{tpu_custom_call.1} parent=71 // loop_header_branch
              %2455 = sbr.rel (%p2453) target = $region79
            $region76: #{tpu_custom_call.1} parent=71 // loop_body
              %v2459 = vld [vmem:[%s2457] sm:%s2450]
              %2460 = vst [vmem:[%s2458] sm:%s2450] %v2459
            $region77: #{tpu_custom_call.1} parent=71 // loop_footer
              %s2456 = sadd.s32 1, %s2452
            $region78: #{tpu_custom_call.1} parent=71 // loop_footer_branch
              %2451 = sbr.rel target = $region74
            $region79: #{tpu_custom_call.1} parent=71 // loop_exit
              _
          $region72: #{tpu_custom_call.1} parent=56 // pred_fallthru
            _
        $region57: #{tpu_custom_call.1} parent=52 // pred_fallthru
          _
        // Predicated region
        $region58: #{tpu_custom_call.1} parent=52 // pred_check
          _
        $region59: #{tpu_custom_call.1} parent=52 // pred_check_branch
          %2434 = sbr.rel (0) target = $region61
        $region60: #{tpu_custom_call.1} parent=52 // pred_region
          %s2436 = ssub.s32 4, 1
          loop: start=0, step=1, limit=1
          $region62: #{tpu_custom_call.1} parent=60 // loop_pre_header
            _
          $region63: #{tpu_custom_call.1} parent=60 // loop_header
            %s2438 = sphi 0, %s2442
            %p2439 = scmp.ge.s32.totalorder %s2438, 1
            %s2443 = sphi [#allocation11], [#allocation11]
            %s2444 = sphi %s7, %s7
          $region64: #{tpu_custom_call.1} parent=60 // loop_header_branch
            %2441 = sbr.rel (%p2439) target = $region68
          $region65: #{tpu_custom_call.1} parent=60 // loop_body
            %v2445 = vld [vmem:[%s2443] sm:%s2436]
            %2446 = vst [vmem:[%s2444] sm:%s2436] %v2445
          $region66: #{tpu_custom_call.1} parent=60 // loop_footer
            %s2442 = sadd.s32 1, %s2438
          $region67: #{tpu_custom_call.1} parent=60 // loop_footer_branch
            %2437 = sbr.rel target = $region63
          $region68: #{tpu_custom_call.1} parent=60 // loop_exit
            _
        $region61: #{tpu_custom_call.1} parent=52 // pred_fallthru
          _
      $region53: #{tpu_custom_call.1} parent=48 // pred_fallthru
        _
      %2461 = vnop
    $region49: #{tpu_custom_call.1} parent=1 // pred_fallthru
      _
    // Predicated region
    $region80: #{tpu_custom_call.1} parent=1 // pred_check
      _
    $region81: #{tpu_custom_call.1} parent=1 // pred_check_branch
      %2463 = sbr.rel (0) target = $region83
    $region82: #{tpu_custom_call.1} parent=1 // pred_region
      _
    $region83: #{tpu_custom_call.1} parent=1 // pred_fallthru
      _
    %2464 = vsyncpa [#allocation5], 1
    %2465 = vsyncpa [#allocation7], 1
    %2466 = vsyncpa [#allocation10], 1

</llo_original>
